<compile_context>
chip_gen: v6e
topology: v6e:2x2x1
jax: 0.10.0
libtpu: 0.0.40
codegen_flags: <defaults>
</compile_context>

<pallas_src>
import jax
import jax.numpy as jnp
from jax.experimental import pallas as pl
from jax.experimental.pallas import tpu as pltpu

NUM_ARMA_LAYERS = 4   # ARMAConv(hidden, hidden, num_layers=4), num_stacks K = 1
LANE = 128            # TPU lane width -- pad narrow output dims to this


# ----------------------------- Pallas kernel -------------------------------
def gnn_local_kernel(x_ref, a_ref, w_pack_ref, b_pack_ref, w_stk_ref,
                     w1_ref, b1_ref, w2_ref, b2_ref, w3_ref, b3_ref,
                     out_ref):
    h_dim = w1_ref.shape[0]
    x0 = x_ref[...]          # [N, H]  bf16 node embeddings (ARMA "root" input)
    a = a_ref[...]           # [N, N]  f32 gcn-normalized dense adjacency (dst, src)

    # One lane-dense matmul for every x0-side projection:
    #   cols [0:H)        -> x0 @ w_init                      (bias slot = 0)
    #   cols [(t+1)H:(t+2)H) -> x0 @ w_root[t] + b_arma[t]    (bias folded in)
    x0_pack = (jnp.dot(x0, w_pack_ref[...], preferred_element_type=jnp.float32)
               + b_pack_ref[...])                              # [N, 256] f32

    out_f32 = None
    for t in range(NUM_ARMA_LAYERS):
        if t == 0:
            h = x0_pack[:, :h_dim]                             # x0 @ w_init
        else:
            h = jnp.dot(out_f32.astype(jnp.bfloat16), w_stk_ref[t - 1],
                        preferred_element_type=jnp.float32)
        # propagate: h[i] = sum_j A[i, j] * h[j]   (A kept f32)
        h = jnp.dot(a, h, preferred_element_type=jnp.float32)
        # root connection + bias (ARMAConv internal dropout p=0.0 -> identity)
        root_b = x0_pack[:, (t + 1) * h_dim:(t + 2) * h_dim]
        out_f32 = jnp.maximum(h + root_b, 0.0)                 # ARMAConv act = ReLU
    # mean over K=1 stacks is identity; F.relu of an already-ReLU'd output is identity.

    h1 = jnp.maximum(
        jnp.dot(out_f32.astype(jnp.bfloat16), w1_ref[...],
                preferred_element_type=jnp.float32) + b1_ref[...], 0.0)     # relu(lin1)
    # F.dropout(p=0.3, training=False) -> identity (inference semantics)
    h2 = jnp.maximum(
        jnp.dot(h1.astype(jnp.bfloat16), w2_ref[...],
                preferred_element_type=jnp.float32) + b2_ref[...], 0.0)     # relu(lin2)
    # lane-dense [N, 128] store; real output lives in cols [0:E)
    out_ref[...] = jnp.tanh(
        jnp.dot(h2.astype(jnp.bfloat16), w3_ref[...],
                preferred_element_type=jnp.float32) + b3_ref[...])


def _full_spec(arr):
    nd = arr.ndim
    return pl.BlockSpec(arr.shape, lambda i, _nd=nd: (0,) * _nd)


def run_gnn_local_kernel(x_emb_bf16, a_norm_f32, kp):
    """x_emb_bf16: [N, H] bf16, a_norm_f32: [N, N] f32. Returns [N, LANE] f32."""
    n = x_emb_bf16.shape[0]
    h = kp["w1"].shape[0]
    inputs = (x_emb_bf16, a_norm_f32,
              kp["w_pack"], kp["b_pack"], kp["w_stack"],
              kp["w1"], kp["b1"], kp["w2"], kp["b2"], kp["w3"], kp["b3"])

    flops = 2 * (n * h * kp["w_pack"].shape[1]            # packed init+root matmul
                 + (NUM_ARMA_LAYERS - 1) * n * h * h      # stack matmuls
                 + NUM_ARMA_LAYERS * n * n * h            # A @ h propagates
                 + n * h * h                              # lin1
                 + n * h * LANE                           # lin2 (padded)
                 + n * LANE * LANE)                       # lin3 (padded)
    bytes_accessed = sum(int(a.size) * a.dtype.itemsize for a in inputs) + n * LANE * 4
    cost = pl.CostEstimate(flops=flops, transcendentals=n * LANE,
                           bytes_accessed=bytes_accessed)

    return pl.pallas_call(
        gnn_local_kernel,
        grid=(1,),
        in_specs=[_full_spec(a) for a in inputs],
        out_specs=pl.BlockSpec((n, LANE), lambda i: (0, 0)),
        out_shape=jax.ShapeDtypeStruct((n, LANE), jnp.float32),
        cost_estimate=cost,
        compiler_params=pltpu.CompilerParams(
            dimension_semantics=("arbitrary",)),
    )(*inputs)


# --------------------------- param preparation ------------------------------
def _pad_to(a, rows, cols):
    return jnp.pad(a, ((0, rows - a.shape[0]), (0, cols - a.shape[1])))


def prepare_kernel_params(params):
    """Pack/pad/cast the natural params into kernel-ready (lane-dense, bf16) form."""
    h = params["w1"].shape[0]
    # pack [w_init | w_root[0] | ... | w_root[3]] -> [H, 5H], pad cols to 256
    w_pack = jnp.concatenate(
        [params["w_init"]] + [params["w_root"][t] for t in range(NUM_ARMA_LAYERS)],
        axis=1)
    pack_cols = pl.cdiv(w_pack.shape[1], LANE) * LANE
    b_pack = jnp.concatenate(
        [jnp.zeros((1, h), jnp.float32)] +
        [params["b_arma"][t] for t in range(NUM_ARMA_LAYERS)], axis=1)
    return {
        "w_pack": _pad_to(w_pack, h, pack_cols).astype(jnp.bfloat16),
        "b_pack": _pad_to(b_pack, 1, pack_cols),                    # f32 (bias adds)
        "w_stack": params["w_stack"].astype(jnp.bfloat16),
        "w1": params["w1"].astype(jnp.bfloat16),
        "b1": params["b1"],
        "w2": _pad_to(params["w2"], h, LANE).astype(jnp.bfloat16),  # [H, 128]
        "b2": _pad_to(params["b2"], 1, LANE),
        "w3": _pad_to(params["w3"], LANE, LANE).astype(jnp.bfloat16),  # [128, 128]
        "b3": _pad_to(params["b3"], 1, LANE),
    }


# ------------------------------- JAX glue -----------------------------------
def _build_graph(x_idx, edge_index, edge_attr, params):
    # embedding_layer(x): simple embedding lookup (gather, glue)
    x = params["emb"][x_idx]                                   # [N, H] f32
    # edge_info = edge_attr.float() / edge_attr.max()
    edge_info = edge_attr.astype(jnp.float32) / edge_attr.max().astype(jnp.float32)
    # gcn_norm (add_self_loops=False, flow=source_to_target), all in f32:
    n = x.shape[0]
    row, col = edge_index[0], edge_index[1]                    # src(j), dst(i)
    deg = jnp.zeros((n,), jnp.float32).at[col].add(edge_info)
    dinv = jnp.where(deg > 0, jax.lax.rsqrt(deg), 0.0)
    norm = dinv[row] * edge_info * dinv[col]
    # dense normalized adjacency: A[dst, src] += norm  (scatter, glue)
    a_norm = jnp.zeros((n, n), jnp.float32).at[col, row].add(norm)
    return x, a_norm


def gnn_local_forward(x_idx, edge_index, edge_attr, params):
    x, a_norm = _build_graph(x_idx, edge_index, edge_attr, params)
    kp = prepare_kernel_params(params)
    out_pad = run_gnn_local_kernel(x.astype(jnp.bfloat16), a_norm, kp)
    e_dim = params["w3"].shape[-1]
    return out_pad[:, :e_dim]


def gnn_local_reference(x_idx, edge_index, edge_attr, params):
    """Pure-JAX f32 reference (unpacked weights) for correctness checking."""
    x, a = _build_graph(x_idx, edge_index, edge_attr, params)
    out = None
    for t in range(NUM_ARMA_LAYERS):
        h = x @ params["w_init"] if t == 0 else out @ params["w_stack"][t - 1]
        h = a @ h
        h = h + x @ params["w_root"][t] + params["b_arma"][t]
        out = jnp.maximum(h, 0.0)
    h = jnp.maximum(out, 0.0)
    h = jnp.maximum(h @ params["w1"] + params["b1"], 0.0)
    h = jnp.maximum(h @ params["w2"] + params["b2"], 0.0)
    return jnp.tanh(h @ params["w3"] + params["b3"])


def init_params(key, vocab, hidden_dim, embedding_dim):
    h, h2, e = hidden_dim, hidden_dim // 2, embedding_dim
    ks = jax.random.split(key, 12)
    s = 0.1
    return {
        "emb":     jax.random.normal(ks[0], (vocab, h), jnp.float32) * s,
        # ARMAConv params (K=1 stack squeezed out)
        "w_init":  jax.random.normal(ks[1], (h, h), jnp.float32) * s,
        "w_stack": jax.random.normal(ks[2], (NUM_ARMA_LAYERS - 1, h, h), jnp.float32) * s,
        "w_root":  jax.random.normal(ks[3], (NUM_ARMA_LAYERS, h, h), jnp.float32) * s,
        "b_arma":  jax.random.normal(ks[4], (NUM_ARMA_LAYERS, 1, h), jnp.float32) * s,
        # Linear weights stored as [in, out] (already transposed vs. torch)
        "w1": jax.random.normal(ks[5], (h, h), jnp.float32) * s,
        "b1": jax.random.normal(ks[6], (1, h), jnp.float32) * s,
        "w2": jax.random.normal(ks[7], (h, h2), jnp.float32) * s,
        "b2": jax.random.normal(ks[8], (1, h2), jnp.float32) * s,
        "w3": jax.random.normal(ks[9], (h2, e), jnp.float32) * s,
        "b3": jax.random.normal(ks[10], (1, e), jnp.float32) * s,
    }


if __name__ == "__main__":
    N, HIDDEN, EMB_DIM, VOCAB, NUM_EDGES = 64, 32, 8, 20, 128

    key = jax.random.PRNGKey(0)
    k_p, k_x, k_ei, k_ea = jax.random.split(key, 4)

    params = init_params(k_p, VOCAB, HIDDEN, EMB_DIM)

    x_idx = jax.random.randint(k_x, (N,), 0, VOCAB, dtype=jnp.int32)
    edge_index = jax.random.randint(k_ei, (2, NUM_EDGES), 0, N, dtype=jnp.int32)
    edge_attr = jax.random.randint(k_ea, (NUM_EDGES,), 1, 6, dtype=jnp.int32)

    out = gnn_local_forward(x_idx, edge_index, edge_attr, params)
    out = jax.block_until_ready(out)

    assert out.shape == (N, EMB_DIM), out.shape
    assert bool(jnp.all(jnp.isfinite(out)))
    assert bool(jnp.all(jnp.abs(out) <= 1.0))   # tanh output range

    # correctness vs pure-JAX f32 reference (tolerance loose for bf16 weights)
    ref = gnn_local_reference(x_idx, edge_index, edge_attr, params)
    max_err = float(jnp.max(jnp.abs(out - ref)))
    assert max_err < 5e-2, f"max abs err vs reference: {max_err}"

    print("KERNEL_OK")
</pallas_src>

<mosaic_0001>
module attributes {stable_mosaic.version = 11 : i64} {
  func.func @gnn_local_kernel(%arg0: i32, %arg1: memref<64x32xbf16, #tpu.memory_space<vmem>>, %arg2: memref<64x64xf32, #tpu.memory_space<vmem>>, %arg3: memref<32x256xbf16, #tpu.memory_space<vmem>>, %arg4: memref<1x256xf32, #tpu.memory_space<vmem>>, %arg5: memref<3x32x32xbf16, #tpu.memory_space<vmem>>, %arg6: memref<32x32xbf16, #tpu.memory_space<vmem>>, %arg7: memref<1x32xf32, #tpu.memory_space<vmem>>, %arg8: memref<32x128xbf16, #tpu.memory_space<vmem>>, %arg9: memref<1x128xf32, #tpu.memory_space<vmem>>, %arg10: memref<128x128xbf16, #tpu.memory_space<vmem>>, %arg11: memref<1x128xf32, #tpu.memory_space<vmem>>, %arg12: memref<64x128xf32, #tpu.memory_space<vmem>>) attributes {dimension_semantics = [#tpu.dimension_semantics<arbitrary>], iteration_bounds = array<i64: 1>, scalar_prefetch = 0 : i64, scratch_operands = 0 : i64, tpu.core_type = #tpu.core_type<tc>, window_params = [{pipeline_mode = #tpu.pipeline_mode<synchronous>, transform_indices = @transform_0, window_bounds = array<i64: 64, 32>}, {pipeline_mode = #tpu.pipeline_mode<synchronous>, transform_indices = @transform_1, window_bounds = array<i64: 64, 64>}, {pipeline_mode = #tpu.pipeline_mode<synchronous>, transform_indices = @transform_2, window_bounds = array<i64: 32, 256>}, {pipeline_mode = #tpu.pipeline_mode<synchronous>, transform_indices = @transform_3, window_bounds = array<i64: 1, 256>}, {pipeline_mode = #tpu.pipeline_mode<synchronous>, transform_indices = @transform_4, window_bounds = array<i64: 3, 32, 32>}, {pipeline_mode = #tpu.pipeline_mode<synchronous>, transform_indices = @transform_5, window_bounds = array<i64: 32, 32>}, {pipeline_mode = #tpu.pipeline_mode<synchronous>, transform_indices = @transform_6, window_bounds = array<i64: 1, 32>}, {pipeline_mode = #tpu.pipeline_mode<synchronous>, transform_indices = @transform_7, window_bounds = array<i64: 32, 128>}, {pipeline_mode = #tpu.pipeline_mode<synchronous>, transform_indices = @transform_8, window_bounds = array<i64: 1, 128>}, {pipeline_mode = #tpu.pipeline_mode<synchronous>, transform_indices = @transform_9, window_bounds = array<i64: 128, 128>}, {pipeline_mode = #tpu.pipeline_mode<synchronous>, transform_indices = @transform_10, window_bounds = array<i64: 1, 128>}, {pipeline_mode = #tpu.pipeline_mode<synchronous>, transform_indices = @transform_11, window_bounds = array<i64: 64, 128>}]} {
    %c0 = arith.constant 0 : index
    %c0_0 = arith.constant 0 : index
    %0 = vector.load %arg1[%c0, %c0_0] : memref<64x32xbf16, #tpu.memory_space<vmem>>, vector<64x32xbf16>
    %c0_1 = arith.constant 0 : index
    %c0_2 = arith.constant 0 : index
    %1 = vector.load %arg2[%c0_1, %c0_2] : memref<64x64xf32, #tpu.memory_space<vmem>>, vector<64x64xf32>
    %c0_3 = arith.constant 0 : index
    %c0_4 = arith.constant 0 : index
    %2 = vector.load %arg3[%c0_3, %c0_4] : memref<32x256xbf16, #tpu.memory_space<vmem>>, vector<32x256xbf16>
    %cst = arith.constant dense<0.000000e+00> : vector<64x256xf32>
    %3 = tpu.matmul %0, %2, %cst {dimension_numbers = #tpu.dot_dimension_numbers<[1], [0], [0], [1], [0, 0, 1, 1], [], []>} : vector<64x32xbf16>, vector<32x256xbf16>, vector<64x256xf32> -> vector<64x256xf32>
    %c0_5 = arith.constant 0 : index
    %c0_6 = arith.constant 0 : index
    %4 = vector.load %arg4[%c0_5, %c0_6] : memref<1x256xf32, #tpu.memory_space<vmem>>, vector<1x256xf32>
    %5 = vector.broadcast %4 : vector<1x256xf32> to vector<64x256xf32>
    %6 = arith.addf %3, %5 : vector<64x256xf32>
    %7 = vector.extract_strided_slice %6 {offsets = [0, 0], sizes = [64, 32], strides = [1, 1]} : vector<64x256xf32> to vector<64x32xf32>
    %cst_7 = arith.constant dense<0.000000e+00> : vector<64x32xf32>
    %8 = tpu.matmul %1, %7, %cst_7 {dimension_numbers = #tpu.dot_dimension_numbers<[1], [0], [0], [1], [0, 0, 1, 1], [], []>} : vector<64x64xf32>, vector<64x32xf32>, vector<64x32xf32> -> vector<64x32xf32>
    %9 = vector.extract_strided_slice %6 {offsets = [0, 32], sizes = [64, 32], strides = [1, 1]} : vector<64x256xf32> to vector<64x32xf32>
    %10 = arith.addf %8, %9 : vector<64x32xf32>
    %cst_8 = arith.constant 0.000000e+00 : f32
    %11 = vector.broadcast %cst_8 : f32 to vector<64x32xf32>
    %12 = arith.maximumf %10, %11 : vector<64x32xf32>
    %13 = arith.truncf %12 : vector<64x32xf32> to vector<64x32xbf16>
    %c0_9 = arith.constant 0 : index
    %c0_10 = arith.constant 0 : index
    %c0_11 = arith.constant 0 : index
    %14 = vector.load %arg5[%c0_9, %c0_10, %c0_11] : memref<3x32x32xbf16, #tpu.memory_space<vmem>>, vector<1x32x32xbf16>
    %15 = vector.shape_cast %14 : vector<1x32x32xbf16> to vector<32x32xbf16>
    %cst_12 = arith.constant dense<0.000000e+00> : vector<64x32xf32>
    %16 = tpu.matmul %13, %15, %cst_12 {dimension_numbers = #tpu.dot_dimension_numbers<[1], [0], [0], [1], [0, 0, 1, 1], [], []>} : vector<64x32xbf16>, vector<32x32xbf16>, vector<64x32xf32> -> vector<64x32xf32>
    %cst_13 = arith.constant dense<0.000000e+00> : vector<64x32xf32>
    %17 = tpu.matmul %1, %16, %cst_13 {dimension_numbers = #tpu.dot_dimension_numbers<[1], [0], [0], [1], [0, 0, 1, 1], [], []>} : vector<64x64xf32>, vector<64x32xf32>, vector<64x32xf32> -> vector<64x32xf32>
    %18 = vector.extract_strided_slice %6 {offsets = [0, 64], sizes = [64, 32], strides = [1, 1]} : vector<64x256xf32> to vector<64x32xf32>
    %19 = arith.addf %17, %18 : vector<64x32xf32>
    %cst_14 = arith.constant 0.000000e+00 : f32
    %20 = vector.broadcast %cst_14 : f32 to vector<64x32xf32>
    %21 = arith.maximumf %19, %20 : vector<64x32xf32>
    %22 = arith.truncf %21 : vector<64x32xf32> to vector<64x32xbf16>
    %c1 = arith.constant 1 : index
    %c0_15 = arith.constant 0 : index
    %c0_16 = arith.constant 0 : index
    %23 = vector.load %arg5[%c1, %c0_15, %c0_16] : memref<3x32x32xbf16, #tpu.memory_space<vmem>>, vector<1x32x32xbf16>
    %24 = vector.shape_cast %23 : vector<1x32x32xbf16> to vector<32x32xbf16>
    %cst_17 = arith.constant dense<0.000000e+00> : vector<64x32xf32>
    %25 = tpu.matmul %22, %24, %cst_17 {dimension_numbers = #tpu.dot_dimension_numbers<[1], [0], [0], [1], [0, 0, 1, 1], [], []>} : vector<64x32xbf16>, vector<32x32xbf16>, vector<64x32xf32> -> vector<64x32xf32>
    %cst_18 = arith.constant dense<0.000000e+00> : vector<64x32xf32>
    %26 = tpu.matmul %1, %25, %cst_18 {dimension_numbers = #tpu.dot_dimension_numbers<[1], [0], [0], [1], [0, 0, 1, 1], [], []>} : vector<64x64xf32>, vector<64x32xf32>, vector<64x32xf32> -> vector<64x32xf32>
    %27 = vector.extract_strided_slice %6 {offsets = [0, 96], sizes = [64, 32], strides = [1, 1]} : vector<64x256xf32> to vector<64x32xf32>
    %28 = arith.addf %26, %27 : vector<64x32xf32>
    %cst_19 = arith.constant 0.000000e+00 : f32
    %29 = vector.broadcast %cst_19 : f32 to vector<64x32xf32>
    %30 = arith.maximumf %28, %29 : vector<64x32xf32>
    %31 = arith.truncf %30 : vector<64x32xf32> to vector<64x32xbf16>
    %c2 = arith.constant 2 : index
    %c0_20 = arith.constant 0 : index
    %c0_21 = arith.constant 0 : index
    %32 = vector.load %arg5[%c2, %c0_20, %c0_21] : memref<3x32x32xbf16, #tpu.memory_space<vmem>>, vector<1x32x32xbf16>
    %33 = vector.shape_cast %32 : vector<1x32x32xbf16> to vector<32x32xbf16>
    %cst_22 = arith.constant dense<0.000000e+00> : vector<64x32xf32>
    %34 = tpu.matmul %31, %33, %cst_22 {dimension_numbers = #tpu.dot_dimension_numbers<[1], [0], [0], [1], [0, 0, 1, 1], [], []>} : vector<64x32xbf16>, vector<32x32xbf16>, vector<64x32xf32> -> vector<64x32xf32>
    %cst_23 = arith.constant dense<0.000000e+00> : vector<64x32xf32>
    %35 = tpu.matmul %1, %34, %cst_23 {dimension_numbers = #tpu.dot_dimension_numbers<[1], [0], [0], [1], [0, 0, 1, 1], [], []>} : vector<64x64xf32>, vector<64x32xf32>, vector<64x32xf32> -> vector<64x32xf32>
    %36 = vector.extract_strided_slice %6 {offsets = [0, 128], sizes = [64, 32], strides = [1, 1]} : vector<64x256xf32> to vector<64x32xf32>
    %37 = arith.addf %35, %36 : vector<64x32xf32>
    %cst_24 = arith.constant 0.000000e+00 : f32
    %38 = vector.broadcast %cst_24 : f32 to vector<64x32xf32>
    %39 = arith.maximumf %37, %38 : vector<64x32xf32>
    %40 = arith.truncf %39 : vector<64x32xf32> to vector<64x32xbf16>
    %c0_25 = arith.constant 0 : index
    %c0_26 = arith.constant 0 : index
    %41 = vector.load %arg6[%c0_25, %c0_26] : memref<32x32xbf16, #tpu.memory_space<vmem>>, vector<32x32xbf16>
    %cst_27 = arith.constant dense<0.000000e+00> : vector<64x32xf32>
    %42 = tpu.matmul %40, %41, %cst_27 {dimension_numbers = #tpu.dot_dimension_numbers<[1], [0], [0], [1], [0, 0, 1, 1], [], []>} : vector<64x32xbf16>, vector<32x32xbf16>, vector<64x32xf32> -> vector<64x32xf32>
    %c0_28 = arith.constant 0 : index
    %c0_29 = arith.constant 0 : index
    %43 = vector.load %arg7[%c0_28, %c0_29] : memref<1x32xf32, #tpu.memory_space<vmem>>, vector<1x32xf32>
    %44 = vector.broadcast %43 : vector<1x32xf32> to vector<64x32xf32>
    %45 = arith.addf %42, %44 : vector<64x32xf32>
    %cst_30 = arith.constant 0.000000e+00 : f32
    %46 = vector.broadcast %cst_30 : f32 to vector<64x32xf32>
    %47 = arith.maximumf %45, %46 : vector<64x32xf32>
    %48 = arith.truncf %47 : vector<64x32xf32> to vector<64x32xbf16>
    %c0_31 = arith.constant 0 : index
    %c0_32 = arith.constant 0 : index
    %49 = vector.load %arg8[%c0_31, %c0_32] : memref<32x128xbf16, #tpu.memory_space<vmem>>, vector<32x128xbf16>
    %cst_33 = arith.constant dense<0.000000e+00> : vector<64x128xf32>
    %50 = tpu.matmul %48, %49, %cst_33 {dimension_numbers = #tpu.dot_dimension_numbers<[1], [0], [0], [1], [0, 0, 1, 1], [], []>} : vector<64x32xbf16>, vector<32x128xbf16>, vector<64x128xf32> -> vector<64x128xf32>
    %c0_34 = arith.constant 0 : index
    %c0_35 = arith.constant 0 : index
    %51 = vector.load %arg9[%c0_34, %c0_35] : memref<1x128xf32, #tpu.memory_space<vmem>>, vector<1x128xf32>
    %52 = vector.broadcast %51 : vector<1x128xf32> to vector<64x128xf32>
    %53 = arith.addf %50, %52 : vector<64x128xf32>
    %cst_36 = arith.constant 0.000000e+00 : f32
    %54 = vector.broadcast %cst_36 : f32 to vector<64x128xf32>
    %55 = arith.maximumf %53, %54 : vector<64x128xf32>
    %56 = arith.truncf %55 : vector<64x128xf32> to vector<64x128xbf16>
    %c0_37 = arith.constant 0 : index
    %c0_38 = arith.constant 0 : index
    %57 = vector.load %arg10[%c0_37, %c0_38] : memref<128x128xbf16, #tpu.memory_space<vmem>>, vector<128x128xbf16>
    %cst_39 = arith.constant dense<0.000000e+00> : vector<64x128xf32>
    %58 = tpu.matmul %56, %57, %cst_39 {dimension_numbers = #tpu.dot_dimension_numbers<[1], [0], [0], [1], [0, 0, 1, 1], [], []>} : vector<64x128xbf16>, vector<128x128xbf16>, vector<64x128xf32> -> vector<64x128xf32>
    %c0_40 = arith.constant 0 : index
    %c0_41 = arith.constant 0 : index
    %59 = vector.load %arg11[%c0_40, %c0_41] : memref<1x128xf32, #tpu.memory_space<vmem>>, vector<1x128xf32>
    %60 = vector.broadcast %59 : vector<1x128xf32> to vector<64x128xf32>
    %61 = arith.addf %58, %60 : vector<64x128xf32>
    %62 = math.tanh %61 : vector<64x128xf32>
    %c0_42 = arith.constant 0 : index
    %c0_43 = arith.constant 0 : index
    %63 = vector.load %arg12[%c0_42, %c0_43] : memref<64x128xf32, #tpu.memory_space<vmem>>, vector<64x128xf32>
    tpu.vector_store %arg12[%c0_42, %c0_43], %62 {strides = array<i32>} : memref<64x128xf32, #tpu.memory_space<vmem>>, vector<64x128xf32>,
    return
  }
  func.func @transform_0(%arg0: i32) -> (i32, i32) {
    %c0_i32 = arith.constant 0 : i32
    %c0_i32_0 = arith.constant 0 : i32
    %c0_i32_1 = arith.constant 0 : i32
    return %c0_i32, %c0_i32_0 : i32, i32
  }
  func.func @transform_1(%arg0: i32) -> (i32, i32) {
    %c0_i32 = arith.constant 0 : i32
    %c0_i32_0 = arith.constant 0 : i32
    %c0_i32_1 = arith.constant 0 : i32
    return %c0_i32, %c0_i32_0 : i32, i32
  }
  func.func @transform_2(%arg0: i32) -> (i32, i32) {
    %c0_i32 = arith.constant 0 : i32
    %c0_i32_0 = arith.constant 0 : i32
    %c0_i32_1 = arith.constant 0 : i32
    return %c0_i32, %c0_i32_0 : i32, i32
  }
  func.func @transform_3(%arg0: i32) -> (i32, i32) {
    %c0_i32 = arith.constant 0 : i32
    %c0_i32_0 = arith.constant 0 : i32
    %c0_i32_1 = arith.constant 0 : i32
    return %c0_i32, %c0_i32_0 : i32, i32
  }
  func.func @transform_4(%arg0: i32) -> (i32, i32, i32) {
    %c0_i32 = arith.constant 0 : i32
    %c0_i32_0 = arith.constant 0 : i32
    %c0_i32_1 = arith.constant 0 : i32
    %c0_i32_2 = arith.constant 0 : i32
    return %c0_i32, %c0_i32_0, %c0_i32_1 : i32, i32, i32
  }
  func.func @transform_5(%arg0: i32) -> (i32, i32) {
    %c0_i32 = arith.constant 0 : i32
    %c0_i32_0 = arith.constant 0 : i32
    %c0_i32_1 = arith.constant 0 : i32
    return %c0_i32, %c0_i32_0 : i32, i32
  }
  func.func @transform_6(%arg0: i32) -> (i32, i32) {
    %c0_i32 = arith.constant 0 : i32
    %c0_i32_0 = arith.constant 0 : i32
    %c0_i32_1 = arith.constant 0 : i32
    return %c0_i32, %c0_i32_0 : i32, i32
  }
  func.func @transform_7(%arg0: i32) -> (i32, i32) {
    %c0_i32 = arith.constant 0 : i32
    %c0_i32_0 = arith.constant 0 : i32
    %c0_i32_1 = arith.constant 0 : i32
    return %c0_i32, %c0_i32_0 : i32, i32
  }
  func.func @transform_8(%arg0: i32) -> (i32, i32) {
    %c0_i32 = arith.constant 0 : i32
    %c0_i32_0 = arith.constant 0 : i32
    %c0_i32_1 = arith.constant 0 : i32
    return %c0_i32, %c0_i32_0 : i32, i32
  }
  func.func @transform_9(%arg0: i32) -> (i32, i32) {
    %c0_i32 = arith.constant 0 : i32
    %c0_i32_0 = arith.constant 0 : i32
    %c0_i32_1 = arith.constant 0 : i32
    return %c0_i32, %c0_i32_0 : i32, i32
  }
  func.func @transform_10(%arg0: i32) -> (i32, i32) {
    %c0_i32 = arith.constant 0 : i32
    %c0_i32_0 = arith.constant 0 : i32
    %c0_i32_1 = arith.constant 0 : i32
    return %c0_i32, %c0_i32_0 : i32, i32
  }
  func.func @transform_11(%arg0: i32) -> (i32, i32) {
    %c0_i32 = arith.constant 0 : i32
    %c0_i32_0 = arith.constant 0 : i32
    %c0_i32_1 = arith.constant 0 : i32
    return %c0_i32, %c0_i32_0 : i32, i32
  }
}

</mosaic_0001>

<llo_original>
// kernel: tpu_custom_call.1
$region0: #{tpu_custom_call.1}
  #allocation0 [shape = 'u32[]', space=smem, size = 0x4, offset = 0x4, fixed_abs, tag = 'smem constant byte address 0x4 - core index']
  #allocation1 [shape = 'u32[144,128]{1,0:T(1,128)}', space=vmem, size = 0x12000, scoped, tag = 'internal scratch']
  %s0 = inlined_call_operand.vmem [shape: bf16[64,32], index: 0, kind: input, shape index: {}]
  %s1 = inlined_call_operand.hbm [shape: f32[64,64], index: 1, kind: input, shape index: {}]
  %s2 = inlined_call_operand.hbm [shape: bf16[32,256], index: 2, kind: input, shape index: {}]
  %s3 = inlined_call_operand.hbm [shape: f32[1,256], index: 3, kind: input, shape index: {}]
  %s4 = inlined_call_operand.hbm [shape: bf16[3,32,32], index: 4, kind: input, shape index: {}]
  %s5 = inlined_call_operand.hbm [shape: bf16[32,32], index: 5, kind: input, shape index: {}]
  %s6 = inlined_call_operand.hbm [shape: f32[1,32], index: 6, kind: input, shape index: {}]
  %s7 = inlined_call_operand.hbm [shape: bf16[32,128], index: 7, kind: input, shape index: {}]
  %s8 = inlined_call_operand.hbm [shape: f32[1,128], index: 8, kind: input, shape index: {}]
  %s9 = inlined_call_operand.vmem [shape: bf16[128,128], index: 9, kind: input, shape index: {}]
  %s10 = inlined_call_operand.vmem [shape: f32[1,128], index: 10, kind: input, shape index: {}]
  %s11 = inlined_call_operand.hbm [shape: f32[64,128], index: 11, kind: output, shape index: {}]
  %s12 = sld [smem:[#allocation0]]
  $region86: #{tpu_custom_call.1} parent=0
    _
  %s14 = ssub.s32 1, %s12
  %s15 = scalar_select 0, %s14, %s12
  $region1: #{tpu_custom_call.1} parent=0
    #allocation2 [shape = 'u8[32768]{0}', space=vmem, size = 0x8000, scoped, tag = 'input window, operand 1, single buffered']
    #allocation3 [shape = 's32[1]{0}', space=sflag, size = 0x4, scoped, tag = 'scoped memory for tpu_custom_call.1']
    #allocation4 [shape = 's32[1]{0}', space=sflag, size = 0x4, scoped, tag = 'scoped memory for tpu_custom_call.1']
    #allocation5 [shape = 'u8[16384]{0}', space=vmem, size = 0x4000, scoped, tag = 'input window, operand 2, single buffered']
    #allocation6 [shape = 's32[1]{0}', space=sflag, size = 0x4, scoped, tag = 'scoped memory for tpu_custom_call.1']
    #allocation7 [shape = 'u8[1024]{0}', space=vmem, size = 0x400, scoped, tag = 'input window, operand 3, single buffered']
    #allocation8 [shape = 'u8[24576]{0}', space=vmem, size = 0x6000, scoped, tag = 'input window, operand 4, single buffered']
    #allocation9 [shape = 's32[1]{0}', space=sflag, size = 0x4, scoped, tag = 'scoped memory for tpu_custom_call.1']
    #allocation10 [shape = 'u8[8192]{0}', space=vmem, size = 0x2000, scoped, tag = 'input window, operand 5, single buffered']
    #allocation11 [shape = 'u8[512]{0}', space=vmem, size = 0x400, scoped, tag = 'input window, operand 6, single buffered']
    #allocation12 [shape = 's32[1]{0}', space=sflag, size = 0x4, scoped, tag = 'scoped memory for tpu_custom_call.1']
    #allocation13 [shape = 'u8[8192]{0}', space=vmem, size = 0x2000, scoped, tag = 'input window, operand 7, single buffered']
    #allocation14 [shape = 'u8[512]{0}', space=vmem, size = 0x400, scoped, tag = 'input window, operand 8, single buffered']
    #allocation15 [shape = 's32[1]{0}', space=sflag, size = 0x4, scoped, tag = 'scoped memory for tpu_custom_call.1']
    #allocation16 [shape = 'u8[32768]{0}', space=vmem, size = 0x8000, scoped, tag = 'output window, operand 0, single buffered']
    %16 = vsyncpa [#allocation3], 0
    %17 = vsyncpa [#allocation6], 0
    %18 = vsyncpa [#allocation9], 0
    %19 = vsyncpa [#allocation12], 0
    %20 = vsyncpa [#allocation15], 0
    %21 = vsyncpa [#allocation4], 0
    // Predicated region
    $region2: #{tpu_custom_call.1} parent=1 // pred_check
      _
    $region3: #{tpu_custom_call.1} parent=1 // pred_check_branch
      %23 = sbr.rel (0) target = $region5
    $region4: #{tpu_custom_call.1} parent=1 // pred_region
      _
    $region5: #{tpu_custom_call.1} parent=1 // pred_fallthru
      _
    // Predicated region
    $region6: #{tpu_custom_call.1} parent=1 // pred_check
      _
    $region7: #{tpu_custom_call.1} parent=1 // pred_check_branch
      %25 = sbr.rel (0) target = $region9
    $region8: #{tpu_custom_call.1} parent=1 // pred_region
      %s27 = ssub.s32 1024, 1024
      %28 = vsyncadd [#allocation3], %s27
      %s29 = sshll.u32 [#allocation2], 4
      %s30 = int_to_ptr.vmem [resolvable:$true] %s29
      %35 = dma.hbm_to_vmem [thread:$0]  %s1, 1024, %s30, [#allocation3], 128, 128, 8
    $region9: #{tpu_custom_call.1} parent=1 // pred_fallthru
      _
    // Predicated region
    $region10: #{tpu_custom_call.1} parent=1 // pred_check
      _
    $region11: #{tpu_custom_call.1} parent=1 // pred_check_branch
      %37 = sbr.rel (0) target = $region13
    $region12: #{tpu_custom_call.1} parent=1 // pred_region
      %s39 = ssub.s32 512, 512
      %40 = vsyncadd [#allocation6], %s39
      %s41 = sshll.u32 [#allocation5], 4
      %s42 = int_to_ptr.vmem [resolvable:$true] %s41
      %47 = dma.hbm_to_vmem [thread:$0]  %s2, 512, %s42, [#allocation6], 128, 128, 8
    $region13: #{tpu_custom_call.1} parent=1 // pred_fallthru
      _
    // Predicated region
    $region14: #{tpu_custom_call.1} parent=1 // pred_check
      _
    $region15: #{tpu_custom_call.1} parent=1 // pred_check_branch
      %49 = sbr.rel (0) target = $region17
    $region16: #{tpu_custom_call.1} parent=1 // pred_region
      %s51 = ssub.s32 32, 32
      %52 = vsyncadd [#allocation6], %s51
      %s54 = sshll.u32 [#allocation7], 4
      %s55 = int_to_ptr.vmem [resolvable:$true] %s54
      %57 = dma.hbm_to_vmem [thread:$0]  %s3, 32, %s55, [#allocation6]
    $region17: #{tpu_custom_call.1} parent=1 // pred_fallthru
      _
    // Predicated region
    $region18: #{tpu_custom_call.1} parent=1 // pred_check
      _
    $region19: #{tpu_custom_call.1} parent=1 // pred_check_branch
      %59 = sbr.rel (0) target = $region21
    $region20: #{tpu_custom_call.1} parent=1 // pred_region
      %s61 = ssub.s32 768, 768
      %62 = vsyncadd [#allocation9], %s61
      %s63 = sshll.u32 [#allocation8], 4
      %s64 = int_to_ptr.vmem [resolvable:$true] %s63
      %69 = dma.hbm_to_vmem [thread:$0]  %s4, 768, %s64, [#allocation9], 64, 64, 4
    $region21: #{tpu_custom_call.1} parent=1 // pred_fallthru
      _
    // Predicated region
    $region22: #{tpu_custom_call.1} parent=1 // pred_check
      _
    $region23: #{tpu_custom_call.1} parent=1 // pred_check_branch
      %71 = sbr.rel (0) target = $region25
    $region24: #{tpu_custom_call.1} parent=1 // pred_region
      %s73 = ssub.s32 256, 256
      %74 = vsyncadd [#allocation9], %s73
      %s75 = sshll.u32 [#allocation10], 4
      %s76 = int_to_ptr.vmem [resolvable:$true] %s75
      %81 = dma.hbm_to_vmem [thread:$0]  %s5, 256, %s76, [#allocation9], 64, 64, 4
    $region25: #{tpu_custom_call.1} parent=1 // pred_fallthru
      _
    // Predicated region
    $region26: #{tpu_custom_call.1} parent=1 // pred_check
      _
    $region27: #{tpu_custom_call.1} parent=1 // pred_check_branch
      %83 = sbr.rel (0) target = $region29
    $region28: #{tpu_custom_call.1} parent=1 // pred_region
      %s85 = ssub.s32 16, 16
      %86 = vsyncadd [#allocation12], %s85
      %s88 = sshll.u32 [#allocation11], 4
      %s89 = int_to_ptr.vmem [resolvable:$true] %s88
      %91 = dma.hbm_to_vmem [thread:$0]  %s6, 16, %s89, [#allocation12]
    $region29: #{tpu_custom_call.1} parent=1 // pred_fallthru
      _
    // Predicated region
    $region30: #{tpu_custom_call.1} parent=1 // pred_check
      _
    $region31: #{tpu_custom_call.1} parent=1 // pred_check_branch
      %93 = sbr.rel (0) target = $region33
    $region32: #{tpu_custom_call.1} parent=1 // pred_region
      %s95 = ssub.s32 256, 256
      %96 = vsyncadd [#allocation12], %s95
      %s97 = sshll.u32 [#allocation13], 4
      %s98 = int_to_ptr.vmem [resolvable:$true] %s97
      %103 = dma.hbm_to_vmem [thread:$0]  %s7, 256, %s98, [#allocation12], 64, 64, 4
    $region33: #{tpu_custom_call.1} parent=1 // pred_fallthru
      _
    // Predicated region
    $region34: #{tpu_custom_call.1} parent=1 // pred_check
      _
    $region35: #{tpu_custom_call.1} parent=1 // pred_check_branch
      %105 = sbr.rel (0) target = $region37
    $region36: #{tpu_custom_call.1} parent=1 // pred_region
      %s107 = ssub.s32 16, 16
      %108 = vsyncadd [#allocation15], %s107
      %s110 = sshll.u32 [#allocation14], 4
      %s111 = int_to_ptr.vmem [resolvable:$true] %s110
      %113 = dma.hbm_to_vmem [thread:$0]  %s8, 16, %s111, [#allocation15]
    $region37: #{tpu_custom_call.1} parent=1 // pred_fallthru
      _
    // Predicated region
    $region38: #{tpu_custom_call.1} parent=1 // pred_check
      _
    $region39: #{tpu_custom_call.1} parent=1 // pred_check_branch
      %115 = sbr.rel (0) target = $region41
    $region40: #{tpu_custom_call.1} parent=1 // pred_region
      _
    $region41: #{tpu_custom_call.1} parent=1 // pred_fallthru
      _
    // Predicated region
    $region42: #{tpu_custom_call.1} parent=1 // pred_check
      _
    $region43: #{tpu_custom_call.1} parent=1 // pred_check_branch
      %117 = sbr.rel (0) target = $region45
    $region44: #{tpu_custom_call.1} parent=1 // pred_region
      _
    $region45: #{tpu_custom_call.1} parent=1 // pred_fallthru
      _
    // Predicated region
    $region46: #{tpu_custom_call.1} parent=1 // pred_check
      _
    $region47: #{tpu_custom_call.1} parent=1 // pred_check_branch
      %119 = sbr.rel (0) target = $region49
    $region48: #{tpu_custom_call.1} parent=1 // pred_region
      %120 = dma.done [#allocation3], 1024
    $region49: #{tpu_custom_call.1} parent=1 // pred_fallthru
      _
    // Predicated region
    $region50: #{tpu_custom_call.1} parent=1 // pred_check
      _
    $region51: #{tpu_custom_call.1} parent=1 // pred_check_branch
      %122 = sbr.rel (0) target = $region53
    $region52: #{tpu_custom_call.1} parent=1 // pred_region
      %123 = dma.done [#allocation6], 512
    $region53: #{tpu_custom_call.1} parent=1 // pred_fallthru
      _
    // Predicated region
    $region54: #{tpu_custom_call.1} parent=1 // pred_check
      _
    $region55: #{tpu_custom_call.1} parent=1 // pred_check_branch
      %125 = sbr.rel (0) target = $region57
    $region56: #{tpu_custom_call.1} parent=1 // pred_region
      %126 = dma.done [#allocation6], 32
    $region57: #{tpu_custom_call.1} parent=1 // pred_fallthru
      _
    // Predicated region
    $region58: #{tpu_custom_call.1} parent=1 // pred_check
      _
    $region59: #{tpu_custom_call.1} parent=1 // pred_check_branch
      %128 = sbr.rel (0) target = $region61
    $region60: #{tpu_custom_call.1} parent=1 // pred_region
      %129 = dma.done [#allocation9], 768
    $region61: #{tpu_custom_call.1} parent=1 // pred_fallthru
      _
    // Predicated region
    $region62: #{tpu_custom_call.1} parent=1 // pred_check
      _
    $region63: #{tpu_custom_call.1} parent=1 // pred_check_branch
      %131 = sbr.rel (0) target = $region65
    $region64: #{tpu_custom_call.1} parent=1 // pred_region
      %132 = dma.done [#allocation9], 256
    $region65: #{tpu_custom_call.1} parent=1 // pred_fallthru
      _
    // Predicated region
    $region66: #{tpu_custom_call.1} parent=1 // pred_check
      _
    $region67: #{tpu_custom_call.1} parent=1 // pred_check_branch
      %134 = sbr.rel (0) target = $region69
    $region68: #{tpu_custom_call.1} parent=1 // pred_region
      %135 = dma.done [#allocation12], 16
    $region69: #{tpu_custom_call.1} parent=1 // pred_fallthru
      _
    // Predicated region
    $region70: #{tpu_custom_call.1} parent=1 // pred_check
      _
    $region71: #{tpu_custom_call.1} parent=1 // pred_check_branch
      %137 = sbr.rel (0) target = $region73
    $region72: #{tpu_custom_call.1} parent=1 // pred_region
      %138 = dma.done [#allocation12], 256
    $region73: #{tpu_custom_call.1} parent=1 // pred_fallthru
      _
    // Predicated region
    $region74: #{tpu_custom_call.1} parent=1 // pred_check
      _
    $region75: #{tpu_custom_call.1} parent=1 // pred_check_branch
      %140 = sbr.rel (0) target = $region77
    $region76: #{tpu_custom_call.1} parent=1 // pred_region
      %141 = dma.done [#allocation15], 16
    $region77: #{tpu_custom_call.1} parent=1 // pred_fallthru
      _
    %v143 = vld [vmem:[%s0] sm:$0xf]
    %v144 = vld [vmem:[%s0 + $0x4] sm:$0xf]
    %v145 = vld [vmem:[%s0 + $0x8] sm:$0xf]
    %v146 = vld [vmem:[%s0 + $0xc] sm:$0xf]
    %v147 = vld [vmem:[%s0 + $0x10] sm:$0xf]
    %v148 = vld [vmem:[%s0 + $0x14] sm:$0xf]
    %v149 = vld [vmem:[%s0 + $0x18] sm:$0xf]
    %v150 = vld [vmem:[%s0 + $0x1c] sm:$0xf]
    %v151 = vld [vmem:[#allocation2] sm:$0xff]
    %v152 = vld [vmem:[#allocation2 + $0x8] sm:$0xff]
    %v153 = vld [vmem:[#allocation2 + $0x10] sm:$0xff]
    %v154 = vld [vmem:[#allocation2 + $0x18] sm:$0xff]
    %v155 = vld [vmem:[#allocation2 + $0x20] sm:$0xff]
    %v156 = vld [vmem:[#allocation2 + $0x28] sm:$0xff]
    %v157 = vld [vmem:[#allocation2 + $0x30] sm:$0xff]
    %v158 = vld [vmem:[#allocation2 + $0x38] sm:$0xff]
    %v159 = vld [vmem:[#allocation5] sm:$0xff]
    %v160 = vld [vmem:[#allocation5 + $0x8] sm:$0xff]
    %v161 = vld [vmem:[#allocation5 + $0x10] sm:$0xff]
    %v162 = vld [vmem:[#allocation5 + $0x18] sm:$0xff]
    %v163 = vld [vmem:[#allocation7] sm:$0x3]
    %v165 = vlaneseq
    %v166 = vshrl.u32 %v165, 7
    %v167 = vsub.s32 0, %v166
    %v168 = vrot.slane %v163, %v167
    %v169 = vlaneseq
    %v170 = vshrl.u32 %v169, 7
    %v171 = vsub.s32 1, %v170
    %v172 = vrot.slane %v163, %v171
    %v183 = vunpack.c.l.b16 %v143
    %v184 = vunpack.c.l.b16 %v144
    %v185 = vunpack.c.l.b16 %v145
    %v186 = vunpack.c.l.b16 %v146
    %v187 = vunpack.c.l.b16 %v147
    %v188 = vunpack.c.l.b16 %v148
    %v189 = vunpack.c.l.b16 %v149
    %v190 = vunpack.c.l.b16 %v150
    %v191 = vpack.c.b16 %v184, %v183
    %v192 = vpack.c.b16 %v186, %v185
    %v193 = vpack.c.b16 %v188, %v187
    %v194 = vpack.c.b16 %v190, %v189
    %v199 = vunpack.c.l.b16 %v159
    %v200 = vunpack.c.h.b16 %v159
    %v201 = vunpack.c.l.b16 %v160
    %v202 = vunpack.c.h.b16 %v160
    %v203 = vunpack.c.l.b16 %v161
    %v204 = vunpack.c.h.b16 %v161
    %v205 = vunpack.c.l.b16 %v162
    %v206 = vunpack.c.h.b16 %v162
    %v207 = vpack.c.b16 %v201, %v199
    %v208 = vpack.c.b16 %v202, %v200
    %v209 = vpack.c.b16 %v205, %v203
    %v210 = vpack.c.b16 %v206, %v204
    %vm215 = vcmask 261120
    %v217 = vsel %vm215, %v191, 0
    %v220 = vsel %vm215, %v192, 0
    %v223 = vsel %vm215, %v193, 0
    %v226 = vsel %vm215, %v194, 0
    %228 = vmatprep.subr.bf16.mxu0 0
    %229 = vmatpush1.bf16.msra.mxu0 0
    %230 = vmatprep.subr.bf16.mxu0 0
    %231 = vmatpush1.bf16.msra.mxu0 0
    %232 = vmatprep.subr.bf16.mxu0 0
    %233 = vmatpush1.bf16.msra.mxu0 0
    %234 = vmatprep.subr.bf16.mxu0 0
    %235 = vmatpush1.bf16.msra.mxu0 0
    %236 = vmatprep.subr.bf16.mxu0 0
    %237 = vmatpush1.bf16.msra.mxu0 0
    %238 = vmatprep.subr.bf16.mxu0 0
    %239 = vmatpush1.bf16.msra.mxu0 0
    %240 = vmatprep.subr.bf16.mxu0 %v210
    %241 = vmatpush1.bf16.msra.mxu0 %v209
    %242 = vmatprep.subr.bf16.mxu0 %v208
    %243 = vmatpush1.bf16.msra.mxu0 %v207
    %244 = vmatprep.subr.bf16.mxu0 0
    %245 = vmatpush2.bf16.msra.mxu0 0
    %246 = vmatprep.subr.bf16.mxu0 0
    %247 = vmatpush2.bf16.msra.mxu0 0
    %248 = vmatprep.subr.bf16.mxu0 0
    %249 = vmatpush2.bf16.msra.mxu0 0
    %250 = vmatprep.subr.bf16.mxu0 0
    %251 = vmatpush2.bf16.msra.mxu0 0
    %252 = vmatprep.subr.bf16.mxu0 0
    %253 = vmatpush2.bf16.msra.mxu0 0
    %254 = vmatprep.subr.bf16.mxu0 0
    %255 = vmatpush2.bf16.msra.mxu0 0
    %256 = vmatprep.subr.bf16.mxu0 0
    %257 = vmatpush2.bf16.msra.mxu0 0
    %258 = vmatprep.subr.bf16.mxu0 0
    %259 = vmatpush2.bf16.msra.mxu0 0
    %260 = vmatprep.mubr.bf16.mxu0 0
    %261 = vmatmul.mubr.bf16.gmra.mxu0 %v217
    %v262 = vpop.f32.mrf.mxu0
    %v263 = vadd.f32 %v168, %v262
    %v264 = vpop.f32.mrf.mxu0
    %v265 = vadd.f32 %v172, %v264
    %v266 = vpop.f32.mrf.mxu0
    %v267 = vadd.f32 %v168, %v266
    %v268 = vpop.f32.mrf.mxu0
    %v269 = vadd.f32 %v172, %v268
    %270 = vmatprep.mubr.bf16.mxu0 0
    %271 = vmatmul.mubr.bf16.gmra.mxu0 %v220
    %v272 = vpop.f32.mrf.mxu0
    %v273 = vadd.f32 %v168, %v272
    %v274 = vpop.f32.mrf.mxu0
    %v275 = vadd.f32 %v172, %v274
    %v276 = vpop.f32.mrf.mxu0
    %v277 = vadd.f32 %v168, %v276
    %v278 = vpop.f32.mrf.mxu0
    %v279 = vadd.f32 %v172, %v278
    %280 = vmatprep.mubr.bf16.mxu0 0
    %281 = vmatmul.mubr.bf16.gmra.mxu0 %v223
    %v282 = vpop.f32.mrf.mxu0
    %v283 = vadd.f32 %v168, %v282
    %v284 = vpop.f32.mrf.mxu0
    %v285 = vadd.f32 %v172, %v284
    %v286 = vpop.f32.mrf.mxu0
    %v287 = vadd.f32 %v168, %v286
    %v288 = vpop.f32.mrf.mxu0
    %v289 = vadd.f32 %v172, %v288
    %290 = vmatprep.mubr.bf16.mxu0 0
    %291 = vmatmul.mubr.bf16.gmra.mxu0 %v226
    %v292 = vpop.f32.mrf.mxu0
    %v293 = vadd.f32 %v168, %v292
    %v294 = vpop.f32.mrf.mxu0
    %v295 = vadd.f32 %v172, %v294
    %v296 = vpop.f32.mrf.mxu0
    %v297 = vadd.f32 %v168, %v296
    %v298 = vpop.f32.mrf.mxu0
    %v299 = vadd.f32 %v172, %v298
    %300 = vdwg.mxu0
    %309 = vrot.lane.b32.xlu0 %v263, 96
    %v310 = vpop.permute.xlu0 %309
    %311 = vrot.lane.b32.xlu0 %v267, 96
    %v312 = vpop.permute.xlu0 %311
    %313 = vrot.lane.b32.xlu0 %v273, 96
    %v314 = vpop.permute.xlu0 %313
    %315 = vrot.lane.b32.xlu0 %v277, 96
    %v316 = vpop.permute.xlu0 %315
    %317 = vrot.lane.b32.xlu0 %v283, 96
    %v318 = vpop.permute.xlu0 %317
    %319 = vrot.lane.b32.xlu0 %v287, 96
    %v320 = vpop.permute.xlu0 %319
    %321 = vrot.lane.b32.xlu0 %v293, 96
    %v322 = vpop.permute.xlu0 %321
    %323 = vrot.lane.b32.xlu0 %v297, 96
    %v324 = vpop.permute.xlu0 %323
    %vm333 = vcmask 523264
    %v335 = vsel %vm333, %v151, 0
    %v338 = vsel %vm333, %v152, 0
    %v341 = vsel %vm333, %v153, 0
    %v344 = vsel %vm333, %v154, 0
    %v347 = vsel %vm333, %v155, 0
    %v350 = vsel %vm333, %v156, 0
    %v353 = vsel %vm333, %v157, 0
    %v356 = vsel %vm333, %v158, 0
    %358 = vmatprep.subr.mxu0 0.0
    %359 = vmatpush1.msra.mxu0 0.0
    %360 = vmatprep.subr.mxu0 0.0
    %361 = vmatpush1.msra.mxu0 0.0
    %362 = vmatprep.subr.mxu0 0.0
    %363 = vmatpush1.msra.mxu0 0.0
    %364 = vmatprep.subr.mxu0 0.0
    %365 = vmatpush1.msra.mxu0 0.0
    %366 = vmatprep.subr.mxu0 0.0
    %367 = vmatpush1.msra.mxu0 0.0
    %368 = vmatprep.subr.mxu0 0.0
    %369 = vmatpush1.msra.mxu0 0.0
    %370 = vmatprep.subr.mxu0 0.0
    %371 = vmatpush1.msra.mxu0 0.0
    %372 = vmatprep.subr.mxu0 0.0
    %373 = vmatpush1.msra.mxu0 0.0
    %374 = vmatprep.subr.mxu0 0.0
    %375 = vmatpush1.msra.mxu0 %v297
    %376 = vmatprep.subr.mxu0 0.0
    %377 = vmatpush1.msra.mxu0 %v293
    %378 = vmatprep.subr.mxu0 0.0
    %379 = vmatpush1.msra.mxu0 %v287
    %380 = vmatprep.subr.mxu0 0.0
    %381 = vmatpush1.msra.mxu0 %v283
    %382 = vmatprep.subr.mxu0 0.0
    %383 = vmatpush1.msra.mxu0 %v277
    %384 = vmatprep.subr.mxu0 0.0
    %385 = vmatpush1.msra.mxu0 %v273
    %386 = vmatprep.subr.mxu0 0.0
    %387 = vmatpush1.msra.mxu0 %v267
    %388 = vmatprep.subr.mxu0 0.0
    %389 = vmatpush1.msra.mxu0 %v263
    %390 = vmatprep.subr.mxu0 0.0
    %391 = vmatpush2.msra.mxu0 0.0
    %392 = vmatprep.subr.mxu0 0.0
    %393 = vmatpush2.msra.mxu0 0.0
    %394 = vmatprep.subr.mxu0 0.0
    %395 = vmatpush2.msra.mxu0 0.0
    %396 = vmatprep.subr.mxu0 0.0
    %397 = vmatpush2.msra.mxu0 0.0
    %398 = vmatprep.subr.mxu0 0.0
    %399 = vmatpush2.msra.mxu0 0.0
    %400 = vmatprep.subr.mxu0 0.0
    %401 = vmatpush2.msra.mxu0 0.0
    %402 = vmatprep.subr.mxu0 0.0
    %403 = vmatpush2.msra.mxu0 0.0
    %404 = vmatprep.subr.mxu0 0.0
    %405 = vmatpush2.msra.mxu0 0.0
    %406 = vmatprep.subr.mxu0 0.0
    %407 = vmatpush2.msra.mxu0 0.0
    %408 = vmatprep.subr.mxu0 0.0
    %409 = vmatpush2.msra.mxu0 0.0
    %410 = vmatprep.subr.mxu0 0.0
    %411 = vmatpush2.msra.mxu0 0.0
    %412 = vmatprep.subr.mxu0 0.0
    %413 = vmatpush2.msra.mxu0 0.0
    %414 = vmatprep.subr.mxu0 0.0
    %415 = vmatpush2.msra.mxu0 0.0
    %416 = vmatprep.subr.mxu0 0.0
    %417 = vmatpush2.msra.mxu0 0.0
    %418 = vmatprep.subr.mxu0 0.0
    %419 = vmatpush2.msra.mxu0 0.0
    %420 = vmatprep.subr.mxu0 0.0
    %421 = vmatpush2.msra.mxu0 0.0
    %422 = vmatprep.mubr.f32.mxu0 0.0
    %423 = vmatmul.mubr.f32.gmra.mxu0 %v335
    %v424 = vpop.f32.mrf.mxu0
    %v425 = vadd.f32 %v310, %v424
    %v426 = vpop.f32.mrf.mxu0
    %427 = vmatprep.mubr.f32.mxu0 0.0
    %428 = vmatmul.mubr.f32.gmra.mxu0 %v338
    %v429 = vpop.f32.mrf.mxu0
    %v430 = vadd.f32 %v312, %v429
    %v431 = vpop.f32.mrf.mxu0
    %432 = vmatprep.mubr.f32.mxu0 0.0
    %433 = vmatmul.mubr.f32.gmra.mxu0 %v341
    %v434 = vpop.f32.mrf.mxu0
    %v435 = vadd.f32 %v314, %v434
    %v436 = vpop.f32.mrf.mxu0
    %437 = vmatprep.mubr.f32.mxu0 0.0
    %438 = vmatmul.mubr.f32.gmra.mxu0 %v344
    %v439 = vpop.f32.mrf.mxu0
    %v440 = vadd.f32 %v316, %v439
    %v441 = vpop.f32.mrf.mxu0
    %442 = vmatprep.mubr.f32.mxu0 0.0
    %443 = vmatmul.mubr.f32.gmra.mxu0 %v347
    %v444 = vpop.f32.mrf.mxu0
    %v445 = vadd.f32 %v318, %v444
    %v446 = vpop.f32.mrf.mxu0
    %447 = vmatprep.mubr.f32.mxu0 0.0
    %448 = vmatmul.mubr.f32.gmra.mxu0 %v350
    %v449 = vpop.f32.mrf.mxu0
    %v450 = vadd.f32 %v320, %v449
    %v451 = vpop.f32.mrf.mxu0
    %452 = vmatprep.mubr.f32.mxu0 0.0
    %453 = vmatmul.mubr.f32.gmra.mxu0 %v353
    %v454 = vpop.f32.mrf.mxu0
    %v455 = vadd.f32 %v322, %v454
    %v456 = vpop.f32.mrf.mxu0
    %457 = vmatprep.mubr.f32.mxu0 0.0
    %458 = vmatmul.mubr.f32.gmra.mxu0 %v356
    %v459 = vpop.f32.mrf.mxu0
    %v460 = vadd.f32 %v324, %v459
    %v461 = vpop.f32.mrf.mxu0
    %462 = vdwg.mxu0
    %v463 = vmax.f32 %v425, 0.0
    %v464 = vmax.f32 %v430, 0.0
    %v465 = vmax.f32 %v435, 0.0
    %v466 = vmax.f32 %v440, 0.0
    %v467 = vmax.f32 %v445, 0.0
    %v468 = vmax.f32 %v450, 0.0
    %v469 = vmax.f32 %v455, 0.0
    %v470 = vmax.f32 %v460, 0.0
    %v471 = vpack.c.bf16 %v464, %v463
    %v472 = vpack.c.bf16 %v466, %v465
    %v473 = vpack.c.bf16 %v468, %v467
    %v474 = vpack.c.bf16 %v470, %v469
    %v475 = vld [vmem:[#allocation8] sm:$0xf]
    %v476 = vld [vmem:[#allocation8 + $0x4] sm:$0xf]
    %v477 = vld [vmem:[#allocation8 + $0x8] sm:$0xf]
    %v478 = vld [vmem:[#allocation8 + $0xc] sm:$0xf]
    %v483 = vunpack.c.l.b16 %v475
    %v484 = vunpack.c.l.b16 %v476
    %v485 = vunpack.c.l.b16 %v477
    %v486 = vunpack.c.l.b16 %v478
    %v487 = vpack.c.b16 %v484, %v483
    %v488 = vpack.c.b16 %v486, %v485
    %v492 = vsel %vm215, %v471, 0
    %v495 = vsel %vm215, %v472, 0
    %v498 = vsel %vm215, %v473, 0
    %v501 = vsel %vm215, %v474, 0
    %503 = vmatprep.subr.bf16.mxu0 0
    %504 = vmatpush1.bf16.msra.mxu0 0
    %505 = vmatprep.subr.bf16.mxu0 0
    %506 = vmatpush1.bf16.msra.mxu0 0
    %507 = vmatprep.subr.bf16.mxu0 0
    %508 = vmatpush1.bf16.msra.mxu0 0
    %509 = vmatprep.subr.bf16.mxu0 0
    %510 = vmatpush1.bf16.msra.mxu0 0
    %511 = vmatprep.subr.bf16.mxu0 0
    %512 = vmatpush1.bf16.msra.mxu0 0
    %513 = vmatprep.subr.bf16.mxu0 0
    %514 = vmatpush1.bf16.msra.mxu0 0
    %515 = vmatprep.subr.bf16.mxu0 0
    %516 = vmatpush1.bf16.msra.mxu0 %v488
    %517 = vmatprep.subr.bf16.mxu0 0
    %518 = vmatpush1.bf16.msra.mxu0 %v487
    %519 = vmatprep.subr.bf16.mxu0 0
    %520 = vmatpush2.bf16.msra.mxu0 0
    %521 = vmatprep.subr.bf16.mxu0 0
    %522 = vmatpush2.bf16.msra.mxu0 0
    %523 = vmatprep.subr.bf16.mxu0 0
    %524 = vmatpush2.bf16.msra.mxu0 0
    %525 = vmatprep.subr.bf16.mxu0 0
    %526 = vmatpush2.bf16.msra.mxu0 0
    %527 = vmatprep.subr.bf16.mxu0 0
    %528 = vmatpush2.bf16.msra.mxu0 0
    %529 = vmatprep.subr.bf16.mxu0 0
    %530 = vmatpush2.bf16.msra.mxu0 0
    %531 = vmatprep.subr.bf16.mxu0 0
    %532 = vmatpush2.bf16.msra.mxu0 0
    %533 = vmatprep.subr.bf16.mxu0 0
    %534 = vmatpush2.bf16.msra.mxu0 0
    %535 = vmatprep.mubr.bf16.mxu0 0
    %536 = vmatmul.mubr.bf16.gmra.mxu0 %v492
    %v537 = vpop.f32.mrf.mxu0
    %v538 = vadd.f32 0.0, %v537
    %v539 = vpop.f32.mrf.mxu0
    %v540 = vpop.f32.mrf.mxu0
    %v541 = vadd.f32 0.0, %v540
    %v542 = vpop.f32.mrf.mxu0
    %543 = vmatprep.mubr.bf16.mxu0 0
    %544 = vmatmul.mubr.bf16.gmra.mxu0 %v495
    %v545 = vpop.f32.mrf.mxu0
    %v546 = vadd.f32 0.0, %v545
    %v547 = vpop.f32.mrf.mxu0
    %v548 = vpop.f32.mrf.mxu0
    %v549 = vadd.f32 0.0, %v548
    %v550 = vpop.f32.mrf.mxu0
    %551 = vmatprep.mubr.bf16.mxu0 0
    %552 = vmatmul.mubr.bf16.gmra.mxu0 %v498
    %v553 = vpop.f32.mrf.mxu0
    %v554 = vadd.f32 0.0, %v553
    %v555 = vpop.f32.mrf.mxu0
    %v556 = vpop.f32.mrf.mxu0
    %v557 = vadd.f32 0.0, %v556
    %v558 = vpop.f32.mrf.mxu0
    %559 = vmatprep.mubr.bf16.mxu0 0
    %560 = vmatmul.mubr.bf16.gmra.mxu0 %v501
    %v561 = vpop.f32.mrf.mxu0
    %v562 = vadd.f32 0.0, %v561
    %v563 = vpop.f32.mrf.mxu0
    %v564 = vpop.f32.mrf.mxu0
    %v565 = vadd.f32 0.0, %v564
    %v566 = vpop.f32.mrf.mxu0
    %567 = vdwg.mxu0
    %568 = vrot.lane.b32.xlu0 %v263, 64
    %v569 = vpop.permute.xlu0 %568
    %570 = vrot.lane.b32.xlu0 %v267, 64
    %v571 = vpop.permute.xlu0 %570
    %572 = vrot.lane.b32.xlu0 %v273, 64
    %v573 = vpop.permute.xlu0 %572
    %574 = vrot.lane.b32.xlu0 %v277, 64
    %v575 = vpop.permute.xlu0 %574
    %576 = vrot.lane.b32.xlu0 %v283, 64
    %v577 = vpop.permute.xlu0 %576
    %578 = vrot.lane.b32.xlu0 %v287, 64
    %v579 = vpop.permute.xlu0 %578
    %580 = vrot.lane.b32.xlu0 %v293, 64
    %v581 = vpop.permute.xlu0 %580
    %582 = vrot.lane.b32.xlu0 %v297, 64
    %v583 = vpop.permute.xlu0 %582
    %592 = vmatprep.subr.mxu0 0.0
    %593 = vmatpush1.msra.mxu0 0.0
    %594 = vmatprep.subr.mxu0 0.0
    %595 = vmatpush1.msra.mxu0 0.0
    %596 = vmatprep.subr.mxu0 0.0
    %597 = vmatpush1.msra.mxu0 0.0
    %598 = vmatprep.subr.mxu0 0.0
    %599 = vmatpush1.msra.mxu0 0.0
    %600 = vmatprep.subr.mxu0 0.0
    %601 = vmatpush1.msra.mxu0 0.0
    %602 = vmatprep.subr.mxu0 0.0
    %603 = vmatpush1.msra.mxu0 0.0
    %604 = vmatprep.subr.mxu0 0.0
    %605 = vmatpush1.msra.mxu0 0.0
    %606 = vmatprep.subr.mxu0 0.0
    %607 = vmatpush1.msra.mxu0 0.0
    %608 = vmatprep.subr.mxu0 0.0
    %609 = vmatpush1.msra.mxu0 %v565
    %610 = vmatprep.subr.mxu0 0.0
    %611 = vmatpush1.msra.mxu0 %v562
    %612 = vmatprep.subr.mxu0 0.0
    %613 = vmatpush1.msra.mxu0 %v557
    %614 = vmatprep.subr.mxu0 0.0
    %615 = vmatpush1.msra.mxu0 %v554
    %616 = vmatprep.subr.mxu0 0.0
    %617 = vmatpush1.msra.mxu0 %v549
    %618 = vmatprep.subr.mxu0 0.0
    %619 = vmatpush1.msra.mxu0 %v546
    %620 = vmatprep.subr.mxu0 0.0
    %621 = vmatpush1.msra.mxu0 %v541
    %622 = vmatprep.subr.mxu0 0.0
    %623 = vmatpush1.msra.mxu0 %v538
    %624 = vmatprep.subr.mxu0 0.0
    %625 = vmatpush2.msra.mxu0 0.0
    %626 = vmatprep.subr.mxu0 0.0
    %627 = vmatpush2.msra.mxu0 0.0
    %628 = vmatprep.subr.mxu0 0.0
    %629 = vmatpush2.msra.mxu0 0.0
    %630 = vmatprep.subr.mxu0 0.0
    %631 = vmatpush2.msra.mxu0 0.0
    %632 = vmatprep.subr.mxu0 0.0
    %633 = vmatpush2.msra.mxu0 0.0
    %634 = vmatprep.subr.mxu0 0.0
    %635 = vmatpush2.msra.mxu0 0.0
    %636 = vmatprep.subr.mxu0 0.0
    %637 = vmatpush2.msra.mxu0 0.0
    %638 = vmatprep.subr.mxu0 0.0
    %639 = vmatpush2.msra.mxu0 0.0
    %640 = vmatprep.subr.mxu0 0.0
    %641 = vmatpush2.msra.mxu0 0.0
    %642 = vmatprep.subr.mxu0 0.0
    %643 = vmatpush2.msra.mxu0 0.0
    %644 = vmatprep.subr.mxu0 0.0
    %645 = vmatpush2.msra.mxu0 0.0
    %646 = vmatprep.subr.mxu0 0.0
    %647 = vmatpush2.msra.mxu0 0.0
    %648 = vmatprep.subr.mxu0 0.0
    %649 = vmatpush2.msra.mxu0 0.0
    %650 = vmatprep.subr.mxu0 0.0
    %651 = vmatpush2.msra.mxu0 0.0
    %652 = vmatprep.subr.mxu0 0.0
    %653 = vmatpush2.msra.mxu0 0.0
    %654 = vmatprep.subr.mxu0 0.0
    %655 = vmatpush2.msra.mxu0 0.0
    %656 = vmatprep.mubr.f32.mxu0 0.0
    %657 = vmatmul.mubr.f32.gmra.mxu0 %v335
    %v658 = vpop.f32.mrf.mxu0
    %v659 = vadd.f32 %v569, %v658
    %v660 = vpop.f32.mrf.mxu0
    %661 = vmatprep.mubr.f32.mxu0 0.0
    %662 = vmatmul.mubr.f32.gmra.mxu0 %v338
    %v663 = vpop.f32.mrf.mxu0
    %v664 = vadd.f32 %v571, %v663
    %v665 = vpop.f32.mrf.mxu0
    %666 = vmatprep.mubr.f32.mxu0 0.0
    %667 = vmatmul.mubr.f32.gmra.mxu0 %v341
    %v668 = vpop.f32.mrf.mxu0
    %v669 = vadd.f32 %v573, %v668
    %v670 = vpop.f32.mrf.mxu0
    %671 = vmatprep.mubr.f32.mxu0 0.0
    %672 = vmatmul.mubr.f32.gmra.mxu0 %v344
    %v673 = vpop.f32.mrf.mxu0
    %v674 = vadd.f32 %v575, %v673
    %v675 = vpop.f32.mrf.mxu0
    %676 = vmatprep.mubr.f32.mxu0 0.0
    %677 = vmatmul.mubr.f32.gmra.mxu0 %v347
    %v678 = vpop.f32.mrf.mxu0
    %v679 = vadd.f32 %v577, %v678
    %v680 = vpop.f32.mrf.mxu0
    %681 = vmatprep.mubr.f32.mxu0 0.0
    %682 = vmatmul.mubr.f32.gmra.mxu0 %v350
    %v683 = vpop.f32.mrf.mxu0
    %v684 = vadd.f32 %v579, %v683
    %v685 = vpop.f32.mrf.mxu0
    %686 = vmatprep.mubr.f32.mxu0 0.0
    %687 = vmatmul.mubr.f32.gmra.mxu0 %v353
    %v688 = vpop.f32.mrf.mxu0
    %v689 = vadd.f32 %v581, %v688
    %v690 = vpop.f32.mrf.mxu0
    %691 = vmatprep.mubr.f32.mxu0 0.0
    %692 = vmatmul.mubr.f32.gmra.mxu0 %v356
    %v693 = vpop.f32.mrf.mxu0
    %v694 = vadd.f32 %v583, %v693
    %v695 = vpop.f32.mrf.mxu0
    %696 = vdwg.mxu0
    %v697 = vmax.f32 %v659, 0.0
    %v698 = vmax.f32 %v664, 0.0
    %v699 = vmax.f32 %v669, 0.0
    %v700 = vmax.f32 %v674, 0.0
    %v701 = vmax.f32 %v679, 0.0
    %v702 = vmax.f32 %v684, 0.0
    %v703 = vmax.f32 %v689, 0.0
    %v704 = vmax.f32 %v694, 0.0
    %v705 = vpack.c.bf16 %v698, %v697
    %v706 = vpack.c.bf16 %v700, %v699
    %v707 = vpack.c.bf16 %v702, %v701
    %v708 = vpack.c.bf16 %v704, %v703
    %s709 = scalar_lea.vmem [#allocation8], 16
    %v710 = vld [vmem:[%s709] sm:$0xf]
    %v711 = vld [vmem:[%s709 + $0x4] sm:$0xf]
    %v712 = vld [vmem:[%s709 + $0x8] sm:$0xf]
    %v713 = vld [vmem:[%s709 + $0xc] sm:$0xf]
    %v718 = vunpack.c.l.b16 %v710
    %v719 = vunpack.c.l.b16 %v711
    %v720 = vunpack.c.l.b16 %v712
    %v721 = vunpack.c.l.b16 %v713
    %v722 = vpack.c.b16 %v719, %v718
    %v723 = vpack.c.b16 %v721, %v720
    %v727 = vsel %vm215, %v705, 0
    %v730 = vsel %vm215, %v706, 0
    %v733 = vsel %vm215, %v707, 0
    %v736 = vsel %vm215, %v708, 0
    %738 = vmatprep.subr.bf16.mxu0 0
    %739 = vmatpush1.bf16.msra.mxu0 0
    %740 = vmatprep.subr.bf16.mxu0 0
    %741 = vmatpush1.bf16.msra.mxu0 0
    %742 = vmatprep.subr.bf16.mxu0 0
    %743 = vmatpush1.bf16.msra.mxu0 0
    %744 = vmatprep.subr.bf16.mxu0 0
    %745 = vmatpush1.bf16.msra.mxu0 0
    %746 = vmatprep.subr.bf16.mxu0 0
    %747 = vmatpush1.bf16.msra.mxu0 0
    %748 = vmatprep.subr.bf16.mxu0 0
    %749 = vmatpush1.bf16.msra.mxu0 0
    %750 = vmatprep.subr.bf16.mxu0 0
    %751 = vmatpush1.bf16.msra.mxu0 %v723
    %752 = vmatprep.subr.bf16.mxu0 0
    %753 = vmatpush1.bf16.msra.mxu0 %v722
    %754 = vmatprep.subr.bf16.mxu0 0
    %755 = vmatpush2.bf16.msra.mxu0 0
    %756 = vmatprep.subr.bf16.mxu0 0
    %757 = vmatpush2.bf16.msra.mxu0 0
    %758 = vmatprep.subr.bf16.mxu0 0
    %759 = vmatpush2.bf16.msra.mxu0 0
    %760 = vmatprep.subr.bf16.mxu0 0
    %761 = vmatpush2.bf16.msra.mxu0 0
    %762 = vmatprep.subr.bf16.mxu0 0
    %763 = vmatpush2.bf16.msra.mxu0 0
    %764 = vmatprep.subr.bf16.mxu0 0
    %765 = vmatpush2.bf16.msra.mxu0 0
    %766 = vmatprep.subr.bf16.mxu0 0
    %767 = vmatpush2.bf16.msra.mxu0 0
    %768 = vmatprep.subr.bf16.mxu0 0
    %769 = vmatpush2.bf16.msra.mxu0 0
    %770 = vmatprep.mubr.bf16.mxu0 0
    %771 = vmatmul.mubr.bf16.gmra.mxu0 %v727
    %v772 = vpop.f32.mrf.mxu0
    %v773 = vadd.f32 0.0, %v772
    %v774 = vpop.f32.mrf.mxu0
    %v775 = vpop.f32.mrf.mxu0
    %v776 = vadd.f32 0.0, %v775
    %v777 = vpop.f32.mrf.mxu0
    %778 = vmatprep.mubr.bf16.mxu0 0
    %779 = vmatmul.mubr.bf16.gmra.mxu0 %v730
    %v780 = vpop.f32.mrf.mxu0
    %v781 = vadd.f32 0.0, %v780
    %v782 = vpop.f32.mrf.mxu0
    %v783 = vpop.f32.mrf.mxu0
    %v784 = vadd.f32 0.0, %v783
    %v785 = vpop.f32.mrf.mxu0
    %786 = vmatprep.mubr.bf16.mxu0 0
    %787 = vmatmul.mubr.bf16.gmra.mxu0 %v733
    %v788 = vpop.f32.mrf.mxu0
    %v789 = vadd.f32 0.0, %v788
    %v790 = vpop.f32.mrf.mxu0
    %v791 = vpop.f32.mrf.mxu0
    %v792 = vadd.f32 0.0, %v791
    %v793 = vpop.f32.mrf.mxu0
    %794 = vmatprep.mubr.bf16.mxu0 0
    %795 = vmatmul.mubr.bf16.gmra.mxu0 %v736
    %v796 = vpop.f32.mrf.mxu0
    %v797 = vadd.f32 0.0, %v796
    %v798 = vpop.f32.mrf.mxu0
    %v799 = vpop.f32.mrf.mxu0
    %v800 = vadd.f32 0.0, %v799
    %v801 = vpop.f32.mrf.mxu0
    %802 = vdwg.mxu0
    %803 = vrot.lane.b32.xlu0 %v263, 32
    %v804 = vpop.permute.xlu0 %803
    %805 = vrot.lane.b32.xlu0 %v267, 32
    %v806 = vpop.permute.xlu0 %805
    %807 = vrot.lane.b32.xlu0 %v273, 32
    %v808 = vpop.permute.xlu0 %807
    %809 = vrot.lane.b32.xlu0 %v277, 32
    %v810 = vpop.permute.xlu0 %809
    %811 = vrot.lane.b32.xlu0 %v283, 32
    %v812 = vpop.permute.xlu0 %811
    %813 = vrot.lane.b32.xlu0 %v287, 32
    %v814 = vpop.permute.xlu0 %813
    %815 = vrot.lane.b32.xlu0 %v293, 32
    %v816 = vpop.permute.xlu0 %815
    %817 = vrot.lane.b32.xlu0 %v297, 32
    %v818 = vpop.permute.xlu0 %817
    %827 = vmatprep.subr.mxu0 0.0
    %828 = vmatpush1.msra.mxu0 0.0
    %829 = vmatprep.subr.mxu0 0.0
    %830 = vmatpush1.msra.mxu0 0.0
    %831 = vmatprep.subr.mxu0 0.0
    %832 = vmatpush1.msra.mxu0 0.0
    %833 = vmatprep.subr.mxu0 0.0
    %834 = vmatpush1.msra.mxu0 0.0
    %835 = vmatprep.subr.mxu0 0.0
    %836 = vmatpush1.msra.mxu0 0.0
    %837 = vmatprep.subr.mxu0 0.0
    %838 = vmatpush1.msra.mxu0 0.0
    %839 = vmatprep.subr.mxu0 0.0
    %840 = vmatpush1.msra.mxu0 0.0
    %841 = vmatprep.subr.mxu0 0.0
    %842 = vmatpush1.msra.mxu0 0.0
    %843 = vmatprep.subr.mxu0 0.0
    %844 = vmatpush1.msra.mxu0 %v800
    %845 = vmatprep.subr.mxu0 0.0
    %846 = vmatpush1.msra.mxu0 %v797
    %847 = vmatprep.subr.mxu0 0.0
    %848 = vmatpush1.msra.mxu0 %v792
    %849 = vmatprep.subr.mxu0 0.0
    %850 = vmatpush1.msra.mxu0 %v789
    %851 = vmatprep.subr.mxu0 0.0
    %852 = vmatpush1.msra.mxu0 %v784
    %853 = vmatprep.subr.mxu0 0.0
    %854 = vmatpush1.msra.mxu0 %v781
    %855 = vmatprep.subr.mxu0 0.0
    %856 = vmatpush1.msra.mxu0 %v776
    %857 = vmatprep.subr.mxu0 0.0
    %858 = vmatpush1.msra.mxu0 %v773
    %859 = vmatprep.subr.mxu0 0.0
    %860 = vmatpush2.msra.mxu0 0.0
    %861 = vmatprep.subr.mxu0 0.0
    %862 = vmatpush2.msra.mxu0 0.0
    %863 = vmatprep.subr.mxu0 0.0
    %864 = vmatpush2.msra.mxu0 0.0
    %865 = vmatprep.subr.mxu0 0.0
    %866 = vmatpush2.msra.mxu0 0.0
    %867 = vmatprep.subr.mxu0 0.0
    %868 = vmatpush2.msra.mxu0 0.0
    %869 = vmatprep.subr.mxu0 0.0
    %870 = vmatpush2.msra.mxu0 0.0
    %871 = vmatprep.subr.mxu0 0.0
    %872 = vmatpush2.msra.mxu0 0.0
    %873 = vmatprep.subr.mxu0 0.0
    %874 = vmatpush2.msra.mxu0 0.0
    %875 = vmatprep.subr.mxu0 0.0
    %876 = vmatpush2.msra.mxu0 0.0
    %877 = vmatprep.subr.mxu0 0.0
    %878 = vmatpush2.msra.mxu0 0.0
    %879 = vmatprep.subr.mxu0 0.0
    %880 = vmatpush2.msra.mxu0 0.0
    %881 = vmatprep.subr.mxu0 0.0
    %882 = vmatpush2.msra.mxu0 0.0
    %883 = vmatprep.subr.mxu0 0.0
    %884 = vmatpush2.msra.mxu0 0.0
    %885 = vmatprep.subr.mxu0 0.0
    %886 = vmatpush2.msra.mxu0 0.0
    %887 = vmatprep.subr.mxu0 0.0
    %888 = vmatpush2.msra.mxu0 0.0
    %889 = vmatprep.subr.mxu0 0.0
    %890 = vmatpush2.msra.mxu0 0.0
    %891 = vmatprep.mubr.f32.mxu0 0.0
    %892 = vmatmul.mubr.f32.gmra.mxu0 %v335
    %v893 = vpop.f32.mrf.mxu0
    %v894 = vadd.f32 %v804, %v893
    %v895 = vpop.f32.mrf.mxu0
    %896 = vmatprep.mubr.f32.mxu0 0.0
    %897 = vmatmul.mubr.f32.gmra.mxu0 %v338
    %v898 = vpop.f32.mrf.mxu0
    %v899 = vadd.f32 %v806, %v898
    %v900 = vpop.f32.mrf.mxu0
    %901 = vmatprep.mubr.f32.mxu0 0.0
    %902 = vmatmul.mubr.f32.gmra.mxu0 %v341
    %v903 = vpop.f32.mrf.mxu0
    %v904 = vadd.f32 %v808, %v903
    %v905 = vpop.f32.mrf.mxu0
    %906 = vmatprep.mubr.f32.mxu0 0.0
    %907 = vmatmul.mubr.f32.gmra.mxu0 %v344
    %v908 = vpop.f32.mrf.mxu0
    %v909 = vadd.f32 %v810, %v908
    %v910 = vpop.f32.mrf.mxu0
    %911 = vmatprep.mubr.f32.mxu0 0.0
    %912 = vmatmul.mubr.f32.gmra.mxu0 %v347
    %v913 = vpop.f32.mrf.mxu0
    %v914 = vadd.f32 %v812, %v913
    %v915 = vpop.f32.mrf.mxu0
    %916 = vmatprep.mubr.f32.mxu0 0.0
    %917 = vmatmul.mubr.f32.gmra.mxu0 %v350
    %v918 = vpop.f32.mrf.mxu0
    %v919 = vadd.f32 %v814, %v918
    %v920 = vpop.f32.mrf.mxu0
    %921 = vmatprep.mubr.f32.mxu0 0.0
    %922 = vmatmul.mubr.f32.gmra.mxu0 %v353
    %v923 = vpop.f32.mrf.mxu0
    %v924 = vadd.f32 %v816, %v923
    %v925 = vpop.f32.mrf.mxu0
    %926 = vmatprep.mubr.f32.mxu0 0.0
    %927 = vmatmul.mubr.f32.gmra.mxu0 %v356
    %v928 = vpop.f32.mrf.mxu0
    %v929 = vadd.f32 %v818, %v928
    %v930 = vpop.f32.mrf.mxu0
    %931 = vdwg.mxu0
    %v932 = vmax.f32 %v894, 0.0
    %v933 = vmax.f32 %v899, 0.0
    %v934 = vmax.f32 %v904, 0.0
    %v935 = vmax.f32 %v909, 0.0
    %v936 = vmax.f32 %v914, 0.0
    %v937 = vmax.f32 %v919, 0.0
    %v938 = vmax.f32 %v924, 0.0
    %v939 = vmax.f32 %v929, 0.0
    %v940 = vpack.c.bf16 %v933, %v932
    %v941 = vpack.c.bf16 %v935, %v934
    %v942 = vpack.c.bf16 %v937, %v936
    %v943 = vpack.c.bf16 %v939, %v938
    %s944 = scalar_lea.vmem [#allocation8], 32
    %v945 = vld [vmem:[%s944] sm:$0xf]
    %v946 = vld [vmem:[%s944 + $0x4] sm:$0xf]
    %v947 = vld [vmem:[%s944 + $0x8] sm:$0xf]
    %v948 = vld [vmem:[%s944 + $0xc] sm:$0xf]
    %v953 = vunpack.c.l.b16 %v945
    %v954 = vunpack.c.l.b16 %v946
    %v955 = vunpack.c.l.b16 %v947
    %v956 = vunpack.c.l.b16 %v948
    %v957 = vpack.c.b16 %v954, %v953
    %v958 = vpack.c.b16 %v956, %v955
    %v962 = vsel %vm215, %v940, 0
    %v965 = vsel %vm215, %v941, 0
    %v968 = vsel %vm215, %v942, 0
    %v971 = vsel %vm215, %v943, 0
    %973 = vmatprep.subr.bf16.mxu0 0
    %974 = vmatpush1.bf16.msra.mxu0 0
    %975 = vmatprep.subr.bf16.mxu0 0
    %976 = vmatpush1.bf16.msra.mxu0 0
    %977 = vmatprep.subr.bf16.mxu0 0
    %978 = vmatpush1.bf16.msra.mxu0 0
    %979 = vmatprep.subr.bf16.mxu0 0
    %980 = vmatpush1.bf16.msra.mxu0 0
    %981 = vmatprep.subr.bf16.mxu0 0
    %982 = vmatpush1.bf16.msra.mxu0 0
    %983 = vmatprep.subr.bf16.mxu0 0
    %984 = vmatpush1.bf16.msra.mxu0 0
    %985 = vmatprep.subr.bf16.mxu0 0
    %986 = vmatpush1.bf16.msra.mxu0 %v958
    %987 = vmatprep.subr.bf16.mxu0 0
    %988 = vmatpush1.bf16.msra.mxu0 %v957
    %989 = vmatprep.subr.bf16.mxu0 0
    %990 = vmatpush2.bf16.msra.mxu0 0
    %991 = vmatprep.subr.bf16.mxu0 0
    %992 = vmatpush2.bf16.msra.mxu0 0
    %993 = vmatprep.subr.bf16.mxu0 0
    %994 = vmatpush2.bf16.msra.mxu0 0
    %995 = vmatprep.subr.bf16.mxu0 0
    %996 = vmatpush2.bf16.msra.mxu0 0
    %997 = vmatprep.subr.bf16.mxu0 0
    %998 = vmatpush2.bf16.msra.mxu0 0
    %999 = vmatprep.subr.bf16.mxu0 0
    %1000 = vmatpush2.bf16.msra.mxu0 0
    %1001 = vmatprep.subr.bf16.mxu0 0
    %1002 = vmatpush2.bf16.msra.mxu0 0
    %1003 = vmatprep.subr.bf16.mxu0 0
    %1004 = vmatpush2.bf16.msra.mxu0 0
    %1005 = vmatprep.mubr.bf16.mxu0 0
    %1006 = vmatmul.mubr.bf16.gmra.mxu0 %v962
    %v1007 = vpop.f32.mrf.mxu0
    %v1008 = vadd.f32 0.0, %v1007
    %v1009 = vpop.f32.mrf.mxu0
    %v1010 = vpop.f32.mrf.mxu0
    %v1011 = vadd.f32 0.0, %v1010
    %v1012 = vpop.f32.mrf.mxu0
    %1013 = vmatprep.mubr.bf16.mxu0 0
    %1014 = vmatmul.mubr.bf16.gmra.mxu0 %v965
    %v1015 = vpop.f32.mrf.mxu0
    %v1016 = vadd.f32 0.0, %v1015
    %v1017 = vpop.f32.mrf.mxu0
    %v1018 = vpop.f32.mrf.mxu0
    %v1019 = vadd.f32 0.0, %v1018
    %v1020 = vpop.f32.mrf.mxu0
    %1021 = vmatprep.mubr.bf16.mxu0 0
    %1022 = vmatmul.mubr.bf16.gmra.mxu0 %v968
    %v1023 = vpop.f32.mrf.mxu0
    %v1024 = vadd.f32 0.0, %v1023
    %v1025 = vpop.f32.mrf.mxu0
    %v1026 = vpop.f32.mrf.mxu0
    %v1027 = vadd.f32 0.0, %v1026
    %v1028 = vpop.f32.mrf.mxu0
    %1029 = vmatprep.mubr.bf16.mxu0 0
    %1030 = vmatmul.mubr.bf16.gmra.mxu0 %v971
    %v1031 = vpop.f32.mrf.mxu0
    %v1032 = vadd.f32 0.0, %v1031
    %v1033 = vpop.f32.mrf.mxu0
    %v1034 = vpop.f32.mrf.mxu0
    %v1035 = vadd.f32 0.0, %v1034
    %v1036 = vpop.f32.mrf.mxu0
    %1037 = vdwg.mxu0
    %1038 = vmatprep.subr.mxu0 0.0
    %1039 = vmatpush1.msra.mxu0 0.0
    %1040 = vmatprep.subr.mxu0 0.0
    %1041 = vmatpush1.msra.mxu0 0.0
    %1042 = vmatprep.subr.mxu0 0.0
    %1043 = vmatpush1.msra.mxu0 0.0
    %1044 = vmatprep.subr.mxu0 0.0
    %1045 = vmatpush1.msra.mxu0 0.0
    %1046 = vmatprep.subr.mxu0 0.0
    %1047 = vmatpush1.msra.mxu0 0.0
    %1048 = vmatprep.subr.mxu0 0.0
    %1049 = vmatpush1.msra.mxu0 0.0
    %1050 = vmatprep.subr.mxu0 0.0
    %1051 = vmatpush1.msra.mxu0 0.0
    %1052 = vmatprep.subr.mxu0 0.0
    %1053 = vmatpush1.msra.mxu0 0.0
    %1054 = vmatprep.subr.mxu0 0.0
    %1055 = vmatpush1.msra.mxu0 %v1035
    %1056 = vmatprep.subr.mxu0 0.0
    %1057 = vmatpush1.msra.mxu0 %v1032
    %1058 = vmatprep.subr.mxu0 0.0
    %1059 = vmatpush1.msra.mxu0 %v1027
    %1060 = vmatprep.subr.mxu0 0.0
    %1061 = vmatpush1.msra.mxu0 %v1024
    %1062 = vmatprep.subr.mxu0 0.0
    %1063 = vmatpush1.msra.mxu0 %v1019
    %1064 = vmatprep.subr.mxu0 0.0
    %1065 = vmatpush1.msra.mxu0 %v1016
    %1066 = vmatprep.subr.mxu0 0.0
    %1067 = vmatpush1.msra.mxu0 %v1011
    %1068 = vmatprep.subr.mxu0 0.0
    %1069 = vmatpush1.msra.mxu0 %v1008
    %1070 = vmatprep.subr.mxu0 0.0
    %1071 = vmatpush2.msra.mxu0 0.0
    %1072 = vmatprep.subr.mxu0 0.0
    %1073 = vmatpush2.msra.mxu0 0.0
    %1074 = vmatprep.subr.mxu0 0.0
    %1075 = vmatpush2.msra.mxu0 0.0
    %1076 = vmatprep.subr.mxu0 0.0
    %1077 = vmatpush2.msra.mxu0 0.0
    %1078 = vmatprep.subr.mxu0 0.0
    %1079 = vmatpush2.msra.mxu0 0.0
    %1080 = vmatprep.subr.mxu0 0.0
    %1081 = vmatpush2.msra.mxu0 0.0
    %1082 = vmatprep.subr.mxu0 0.0
    %1083 = vmatpush2.msra.mxu0 0.0
    %1084 = vmatprep.subr.mxu0 0.0
    %1085 = vmatpush2.msra.mxu0 0.0
    %1086 = vmatprep.subr.mxu0 0.0
    %1087 = vmatpush2.msra.mxu0 0.0
    %1088 = vmatprep.subr.mxu0 0.0
    %1089 = vmatpush2.msra.mxu0 0.0
    %1090 = vmatprep.subr.mxu0 0.0
    %1091 = vmatpush2.msra.mxu0 0.0
    %1092 = vmatprep.subr.mxu0 0.0
    %1093 = vmatpush2.msra.mxu0 0.0
    %1094 = vmatprep.subr.mxu0 0.0
    %1095 = vmatpush2.msra.mxu0 0.0
    %1096 = vmatprep.subr.mxu0 0.0
    %1097 = vmatpush2.msra.mxu0 0.0
    %1098 = vmatprep.subr.mxu0 0.0
    %1099 = vmatpush2.msra.mxu0 0.0
    %1100 = vmatprep.subr.mxu0 0.0
    %1101 = vmatpush2.msra.mxu0 0.0
    %1102 = vmatprep.mubr.f32.mxu0 0.0
    %1103 = vmatmul.mubr.f32.gmra.mxu0 %v335
    %v1104 = vpop.f32.mrf.mxu0
    %v1105 = vadd.f32 %v265, %v1104
    %v1106 = vpop.f32.mrf.mxu0
    %1107 = vmatprep.mubr.f32.mxu0 0.0
    %1108 = vmatmul.mubr.f32.gmra.mxu0 %v338
    %v1109 = vpop.f32.mrf.mxu0
    %v1110 = vadd.f32 %v269, %v1109
    %v1111 = vpop.f32.mrf.mxu0
    %1112 = vmatprep.mubr.f32.mxu0 0.0
    %1113 = vmatmul.mubr.f32.gmra.mxu0 %v341
    %v1114 = vpop.f32.mrf.mxu0
    %v1115 = vadd.f32 %v275, %v1114
    %v1116 = vpop.f32.mrf.mxu0
    %1117 = vmatprep.mubr.f32.mxu0 0.0
    %1118 = vmatmul.mubr.f32.gmra.mxu0 %v344
    %v1119 = vpop.f32.mrf.mxu0
    %v1120 = vadd.f32 %v279, %v1119
    %v1121 = vpop.f32.mrf.mxu0
    %1122 = vmatprep.mubr.f32.mxu0 0.0
    %1123 = vmatmul.mubr.f32.gmra.mxu0 %v347
    %v1124 = vpop.f32.mrf.mxu0
    %v1125 = vadd.f32 %v285, %v1124
    %v1126 = vpop.f32.mrf.mxu0
    %1127 = vmatprep.mubr.f32.mxu0 0.0
    %1128 = vmatmul.mubr.f32.gmra.mxu0 %v350
    %v1129 = vpop.f32.mrf.mxu0
    %v1130 = vadd.f32 %v289, %v1129
    %v1131 = vpop.f32.mrf.mxu0
    %1132 = vmatprep.mubr.f32.mxu0 0.0
    %1133 = vmatmul.mubr.f32.gmra.mxu0 %v353
    %v1134 = vpop.f32.mrf.mxu0
    %v1135 = vadd.f32 %v295, %v1134
    %v1136 = vpop.f32.mrf.mxu0
    %1137 = vmatprep.mubr.f32.mxu0 0.0
    %1138 = vmatmul.mubr.f32.gmra.mxu0 %v356
    %v1139 = vpop.f32.mrf.mxu0
    %v1140 = vadd.f32 %v299, %v1139
    %v1141 = vpop.f32.mrf.mxu0
    %1142 = vdwg.mxu0
    %v1143 = vmax.f32 %v1105, 0.0
    %v1144 = vmax.f32 %v1110, 0.0
    %v1145 = vmax.f32 %v1115, 0.0
    %v1146 = vmax.f32 %v1120, 0.0
    %v1147 = vmax.f32 %v1125, 0.0
    %v1148 = vmax.f32 %v1130, 0.0
    %v1149 = vmax.f32 %v1135, 0.0
    %v1150 = vmax.f32 %v1140, 0.0
    %v1151 = vpack.c.bf16 %v1144, %v1143
    %v1152 = vpack.c.bf16 %v1146, %v1145
    %v1153 = vpack.c.bf16 %v1148, %v1147
    %v1154 = vpack.c.bf16 %v1150, %v1149
    %v1155 = vld [vmem:[#allocation10] sm:$0xf]
    %v1156 = vld [vmem:[#allocation10 + $0x4] sm:$0xf]
    %v1157 = vld [vmem:[#allocation10 + $0x8] sm:$0xf]
    %v1158 = vld [vmem:[#allocation10 + $0xc] sm:$0xf]
    %v1159 = vld [vmem:[#allocation11] sm:$0x1]
    %v1161 = vlaneseq
    %v1162 = vshrl.u32 %v1161, 7
    %v1163 = vsub.s32 0, %v1162
    %v1164 = vrot.slane %v1159, %v1163
    %v1170 = vunpack.c.l.b16 %v1155
    %v1171 = vunpack.c.l.b16 %v1156
    %v1172 = vunpack.c.l.b16 %v1157
    %v1173 = vunpack.c.l.b16 %v1158
    %v1174 = vpack.c.b16 %v1171, %v1170
    %v1175 = vpack.c.b16 %v1173, %v1172
    %v1179 = vsel %vm215, %v1151, 0
    %v1182 = vsel %vm215, %v1152, 0
    %v1185 = vsel %vm215, %v1153, 0
    %v1188 = vsel %vm215, %v1154, 0
    %1190 = vmatprep.subr.bf16.mxu0 0
    %1191 = vmatpush1.bf16.msra.mxu0 0
    %1192 = vmatprep.subr.bf16.mxu0 0
    %1193 = vmatpush1.bf16.msra.mxu0 0
    %1194 = vmatprep.subr.bf16.mxu0 0
    %1195 = vmatpush1.bf16.msra.mxu0 0
    %1196 = vmatprep.subr.bf16.mxu0 0
    %1197 = vmatpush1.bf16.msra.mxu0 0
    %1198 = vmatprep.subr.bf16.mxu0 0
    %1199 = vmatpush1.bf16.msra.mxu0 0
    %1200 = vmatprep.subr.bf16.mxu0 0
    %1201 = vmatpush1.bf16.msra.mxu0 0
    %1202 = vmatprep.subr.bf16.mxu0 0
    %1203 = vmatpush1.bf16.msra.mxu0 %v1175
    %1204 = vmatprep.subr.bf16.mxu0 0
    %1205 = vmatpush1.bf16.msra.mxu0 %v1174
    %1206 = vmatprep.subr.bf16.mxu0 0
    %1207 = vmatpush2.bf16.msra.mxu0 0
    %1208 = vmatprep.subr.bf16.mxu0 0
    %1209 = vmatpush2.bf16.msra.mxu0 0
    %1210 = vmatprep.subr.bf16.mxu0 0
    %1211 = vmatpush2.bf16.msra.mxu0 0
    %1212 = vmatprep.subr.bf16.mxu0 0
    %1213 = vmatpush2.bf16.msra.mxu0 0
    %1214 = vmatprep.subr.bf16.mxu0 0
    %1215 = vmatpush2.bf16.msra.mxu0 0
    %1216 = vmatprep.subr.bf16.mxu0 0
    %1217 = vmatpush2.bf16.msra.mxu0 0
    %1218 = vmatprep.subr.bf16.mxu0 0
    %1219 = vmatpush2.bf16.msra.mxu0 0
    %1220 = vmatprep.subr.bf16.mxu0 0
    %1221 = vmatpush2.bf16.msra.mxu0 0
    %1222 = vmatprep.mubr.bf16.mxu0 0
    %1223 = vmatmul.mubr.bf16.gmra.mxu0 %v1179
    %v1224 = vpop.f32.mrf.mxu0
    %v1225 = vadd.f32 %v1164, %v1224
    %v1226 = vpop.f32.mrf.mxu0
    %v1227 = vpop.f32.mrf.mxu0
    %v1228 = vadd.f32 %v1164, %v1227
    %v1229 = vpop.f32.mrf.mxu0
    %1230 = vmatprep.mubr.bf16.mxu0 0
    %1231 = vmatmul.mubr.bf16.gmra.mxu0 %v1182
    %v1232 = vpop.f32.mrf.mxu0
    %v1233 = vadd.f32 %v1164, %v1232
    %v1234 = vpop.f32.mrf.mxu0
    %v1235 = vpop.f32.mrf.mxu0
    %v1236 = vadd.f32 %v1164, %v1235
    %v1237 = vpop.f32.mrf.mxu0
    %1238 = vmatprep.mubr.bf16.mxu0 0
    %1239 = vmatmul.mubr.bf16.gmra.mxu0 %v1185
    %v1240 = vpop.f32.mrf.mxu0
    %v1241 = vadd.f32 %v1164, %v1240
    %v1242 = vpop.f32.mrf.mxu0
    %v1243 = vpop.f32.mrf.mxu0
    %v1244 = vadd.f32 %v1164, %v1243
    %v1245 = vpop.f32.mrf.mxu0
    %1246 = vmatprep.mubr.bf16.mxu0 0
    %1247 = vmatmul.mubr.bf16.gmra.mxu0 %v1188
    %v1248 = vpop.f32.mrf.mxu0
    %v1249 = vadd.f32 %v1164, %v1248
    %v1250 = vpop.f32.mrf.mxu0
    %v1251 = vpop.f32.mrf.mxu0
    %v1252 = vadd.f32 %v1164, %v1251
    %v1253 = vpop.f32.mrf.mxu0
    %1254 = vdwg.mxu0
    %v1255 = vmax.f32 %v1225, 0.0
    %v1256 = vmax.f32 %v1228, 0.0
    %v1257 = vmax.f32 %v1233, 0.0
    %v1258 = vmax.f32 %v1236, 0.0
    %v1259 = vmax.f32 %v1241, 0.0
    %v1260 = vmax.f32 %v1244, 0.0
    %v1261 = vmax.f32 %v1249, 0.0
    %v1262 = vmax.f32 %v1252, 0.0
    %v1263 = vpack.c.bf16 %v1256, %v1255
    %v1264 = vpack.c.bf16 %v1258, %v1257
    %v1265 = vpack.c.bf16 %v1260, %v1259
    %v1266 = vpack.c.bf16 %v1262, %v1261
    %v1267 = vld [vmem:[#allocation13] sm:$0xf]
    %v1268 = vld [vmem:[#allocation13 + $0x4] sm:$0xf]
    %v1269 = vld [vmem:[#allocation13 + $0x8] sm:$0xf]
    %v1270 = vld [vmem:[#allocation13 + $0xc] sm:$0xf]
    %v1271 = vld [vmem:[#allocation14] sm:$0x1]
    %v1273 = vlaneseq
    %v1274 = vshrl.u32 %v1273, 7
    %v1275 = vsub.s32 0, %v1274
    %v1276 = vrot.slane %v1271, %v1275
    %v1282 = vunpack.c.l.b16 %v1267
    %v1283 = vunpack.c.l.b16 %v1268
    %v1284 = vunpack.c.l.b16 %v1269
    %v1285 = vunpack.c.l.b16 %v1270
    %v1286 = vpack.c.b16 %v1283, %v1282
    %v1287 = vpack.c.b16 %v1285, %v1284
    %v1291 = vsel %vm215, %v1263, 0
    %v1294 = vsel %vm215, %v1264, 0
    %v1297 = vsel %vm215, %v1265, 0
    %v1300 = vsel %vm215, %v1266, 0
    %1302 = vmatprep.subr.bf16.mxu0 0
    %1303 = vmatpush1.bf16.msra.mxu0 0
    %1304 = vmatprep.subr.bf16.mxu0 0
    %1305 = vmatpush1.bf16.msra.mxu0 0
    %1306 = vmatprep.subr.bf16.mxu0 0
    %1307 = vmatpush1.bf16.msra.mxu0 0
    %1308 = vmatprep.subr.bf16.mxu0 0
    %1309 = vmatpush1.bf16.msra.mxu0 0
    %1310 = vmatprep.subr.bf16.mxu0 0
    %1311 = vmatpush1.bf16.msra.mxu0 0
    %1312 = vmatprep.subr.bf16.mxu0 0
    %1313 = vmatpush1.bf16.msra.mxu0 0
    %1314 = vmatprep.subr.bf16.mxu0 0
    %1315 = vmatpush1.bf16.msra.mxu0 %v1287
    %1316 = vmatprep.subr.bf16.mxu0 0
    %1317 = vmatpush1.bf16.msra.mxu0 %v1286
    %1318 = vmatprep.subr.bf16.mxu0 0
    %1319 = vmatpush2.bf16.msra.mxu0 0
    %1320 = vmatprep.subr.bf16.mxu0 0
    %1321 = vmatpush2.bf16.msra.mxu0 0
    %1322 = vmatprep.subr.bf16.mxu0 0
    %1323 = vmatpush2.bf16.msra.mxu0 0
    %1324 = vmatprep.subr.bf16.mxu0 0
    %1325 = vmatpush2.bf16.msra.mxu0 0
    %1326 = vmatprep.subr.bf16.mxu0 0
    %1327 = vmatpush2.bf16.msra.mxu0 0
    %1328 = vmatprep.subr.bf16.mxu0 0
    %1329 = vmatpush2.bf16.msra.mxu0 0
    %1330 = vmatprep.subr.bf16.mxu0 0
    %1331 = vmatpush2.bf16.msra.mxu0 0
    %1332 = vmatprep.subr.bf16.mxu0 0
    %1333 = vmatpush2.bf16.msra.mxu0 0
    %1334 = vmatprep.mubr.bf16.mxu0 0
    %1335 = vmatmul.mubr.bf16.gmra.mxu0 %v1291
    %v1336 = vpop.f32.mrf.mxu0
    %v1337 = vadd.f32 %v1276, %v1336
    %v1338 = vpop.f32.mrf.mxu0
    %v1339 = vpop.f32.mrf.mxu0
    %v1340 = vadd.f32 %v1276, %v1339
    %v1341 = vpop.f32.mrf.mxu0
    %1342 = vmatprep.mubr.bf16.mxu0 0
    %1343 = vmatmul.mubr.bf16.gmra.mxu0 %v1294
    %v1344 = vpop.f32.mrf.mxu0
    %v1345 = vadd.f32 %v1276, %v1344
    %v1346 = vpop.f32.mrf.mxu0
    %v1347 = vpop.f32.mrf.mxu0
    %v1348 = vadd.f32 %v1276, %v1347
    %v1349 = vpop.f32.mrf.mxu0
    %1350 = vmatprep.mubr.bf16.mxu0 0
    %1351 = vmatmul.mubr.bf16.gmra.mxu0 %v1297
    %v1352 = vpop.f32.mrf.mxu0
    %v1353 = vadd.f32 %v1276, %v1352
    %v1354 = vpop.f32.mrf.mxu0
    %v1355 = vpop.f32.mrf.mxu0
    %v1356 = vadd.f32 %v1276, %v1355
    %v1357 = vpop.f32.mrf.mxu0
    %1358 = vmatprep.mubr.bf16.mxu0 0
    %1359 = vmatmul.mubr.bf16.gmra.mxu0 %v1300
    %v1360 = vpop.f32.mrf.mxu0
    %v1361 = vadd.f32 %v1276, %v1360
    %v1362 = vpop.f32.mrf.mxu0
    %v1363 = vpop.f32.mrf.mxu0
    %v1364 = vadd.f32 %v1276, %v1363
    %v1365 = vpop.f32.mrf.mxu0
    %1366 = vdwg.mxu0
    %v1367 = vmax.f32 %v1337, 0.0
    %v1368 = vmax.f32 %v1340, 0.0
    %v1369 = vmax.f32 %v1345, 0.0
    %v1370 = vmax.f32 %v1348, 0.0
    %v1371 = vmax.f32 %v1353, 0.0
    %v1372 = vmax.f32 %v1356, 0.0
    %v1373 = vmax.f32 %v1361, 0.0
    %v1374 = vmax.f32 %v1364, 0.0
    %v1375 = vpack.c.bf16 %v1368, %v1367
    %v1376 = vpack.c.bf16 %v1370, %v1369
    %v1377 = vpack.c.bf16 %v1372, %v1371
    %v1378 = vpack.c.bf16 %v1374, %v1373
    %v1379 = vld [vmem:[%s9] sm:$0xf]
    %v1380 = vld [vmem:[%s9 + $0x4] sm:$0xf]
    %v1381 = vld [vmem:[%s9 + $0x8] sm:$0xf]
    %v1382 = vld [vmem:[%s9 + $0xc] sm:$0xf]
    %v1383 = vld [vmem:[%s9 + $0x10] sm:$0xf]
    %v1384 = vld [vmem:[%s9 + $0x14] sm:$0xf]
    %v1385 = vld [vmem:[%s9 + $0x18] sm:$0xf]
    %v1386 = vld [vmem:[%s9 + $0x1c] sm:$0xf]
    %v1387 = vld [vmem:[%s9 + $0x20] sm:$0xf]
    %v1388 = vld [vmem:[%s9 + $0x24] sm:$0xf]
    %v1389 = vld [vmem:[%s9 + $0x28] sm:$0xf]
    %v1390 = vld [vmem:[%s9 + $0x2c] sm:$0xf]
    %v1391 = vld [vmem:[%s9 + $0x30] sm:$0xf]
    %v1392 = vld [vmem:[%s9 + $0x34] sm:$0xf]
    %v1393 = vld [vmem:[%s9 + $0x38] sm:$0xf]
    %v1394 = vld [vmem:[%s9 + $0x3c] sm:$0xf]
    %v1395 = vld [vmem:[%s10] sm:$0x1]
    %v1397 = vlaneseq
    %v1398 = vshrl.u32 %v1397, 7
    %v1399 = vsub.s32 0, %v1398
    %v1400 = vrot.slane %v1395, %v1399
    %v1418 = vunpack.c.l.b16 %v1379
    %v1419 = vunpack.c.l.b16 %v1380
    %v1420 = vunpack.c.l.b16 %v1381
    %v1421 = vunpack.c.l.b16 %v1382
    %v1422 = vunpack.c.l.b16 %v1383
    %v1423 = vunpack.c.l.b16 %v1384
    %v1424 = vunpack.c.l.b16 %v1385
    %v1425 = vunpack.c.l.b16 %v1386
    %v1426 = vunpack.c.l.b16 %v1387
    %v1427 = vunpack.c.l.b16 %v1388
    %v1428 = vunpack.c.l.b16 %v1389
    %v1429 = vunpack.c.l.b16 %v1390
    %v1430 = vunpack.c.l.b16 %v1391
    %v1431 = vunpack.c.l.b16 %v1392
    %v1432 = vunpack.c.l.b16 %v1393
    %v1433 = vunpack.c.l.b16 %v1394
    %v1434 = vpack.c.b16 %v1419, %v1418
    %v1435 = vpack.c.b16 %v1421, %v1420
    %v1436 = vpack.c.b16 %v1423, %v1422
    %v1437 = vpack.c.b16 %v1425, %v1424
    %v1438 = vpack.c.b16 %v1427, %v1426
    %v1439 = vpack.c.b16 %v1429, %v1428
    %v1440 = vpack.c.b16 %v1431, %v1430
    %v1441 = vpack.c.b16 %v1433, %v1432
    %1450 = vmatprep.subr.bf16.mxu0 0
    %1451 = vmatpush1.bf16.msra.mxu0 %v1441
    %1452 = vmatprep.subr.bf16.mxu0 0
    %1453 = vmatpush1.bf16.msra.mxu0 %v1440
    %1454 = vmatprep.subr.bf16.mxu0 0
    %1455 = vmatpush1.bf16.msra.mxu0 %v1439
    %1456 = vmatprep.subr.bf16.mxu0 0
    %1457 = vmatpush1.bf16.msra.mxu0 %v1438
    %1458 = vmatprep.subr.bf16.mxu0 0
    %1459 = vmatpush1.bf16.msra.mxu0 %v1437
    %1460 = vmatprep.subr.bf16.mxu0 0
    %1461 = vmatpush1.bf16.msra.mxu0 %v1436
    %1462 = vmatprep.subr.bf16.mxu0 0
    %1463 = vmatpush1.bf16.msra.mxu0 %v1435
    %1464 = vmatprep.subr.bf16.mxu0 0
    %1465 = vmatpush1.bf16.msra.mxu0 %v1434
    %1466 = vmatprep.subr.bf16.mxu0 0
    %1467 = vmatpush2.bf16.msra.mxu0 0
    %1468 = vmatprep.subr.bf16.mxu0 0
    %1469 = vmatpush2.bf16.msra.mxu0 0
    %1470 = vmatprep.subr.bf16.mxu0 0
    %1471 = vmatpush2.bf16.msra.mxu0 0
    %1472 = vmatprep.subr.bf16.mxu0 0
    %1473 = vmatpush2.bf16.msra.mxu0 0
    %1474 = vmatprep.subr.bf16.mxu0 0
    %1475 = vmatpush2.bf16.msra.mxu0 0
    %1476 = vmatprep.subr.bf16.mxu0 0
    %1477 = vmatpush2.bf16.msra.mxu0 0
    %1478 = vmatprep.subr.bf16.mxu0 0
    %1479 = vmatpush2.bf16.msra.mxu0 0
    %1480 = vmatprep.subr.bf16.mxu0 0
    %1481 = vmatpush2.bf16.msra.mxu0 0
    %1482 = vmatprep.mubr.bf16.mxu0 0
    %1483 = vmatmul.mubr.bf16.gmra.mxu0 %v1375
    %v1484 = vpop.f32.mrf.mxu0
    %v1485 = vadd.f32 %v1400, %v1484
    %v1486 = vpop.f32.mrf.mxu0
    %v1487 = vpop.f32.mrf.mxu0
    %v1488 = vadd.f32 %v1400, %v1487
    %v1489 = vpop.f32.mrf.mxu0
    %1490 = vmatprep.mubr.bf16.mxu0 0
    %1491 = vmatmul.mubr.bf16.gmra.mxu0 %v1376
    %v1492 = vpop.f32.mrf.mxu0
    %v1493 = vadd.f32 %v1400, %v1492
    %v1494 = vpop.f32.mrf.mxu0
    %v1495 = vpop.f32.mrf.mxu0
    %v1496 = vadd.f32 %v1400, %v1495
    %v1497 = vpop.f32.mrf.mxu0
    %1498 = vmatprep.mubr.bf16.mxu0 0
    %1499 = vmatmul.mubr.bf16.gmra.mxu0 %v1377
    %v1500 = vpop.f32.mrf.mxu0
    %v1501 = vadd.f32 %v1400, %v1500
    %v1502 = vpop.f32.mrf.mxu0
    %v1503 = vpop.f32.mrf.mxu0
    %v1504 = vadd.f32 %v1400, %v1503
    %v1505 = vpop.f32.mrf.mxu0
    %1506 = vmatprep.mubr.bf16.mxu0 0
    %1507 = vmatmul.mubr.bf16.gmra.mxu0 %v1378
    %v1508 = vpop.f32.mrf.mxu0
    %v1509 = vadd.f32 %v1400, %v1508
    %v1510 = vpop.f32.mrf.mxu0
    %v1511 = vpop.f32.mrf.mxu0
    %v1512 = vadd.f32 %v1400, %v1511
    %v1513 = vpop.f32.mrf.mxu0
    %1514 = vdwg.mxu0
    %v1515 = vtanh.pop %v1485
    %v1516 = vtanh.pop %v1488
    %v1517 = vtanh.pop %v1493
    %v1518 = vtanh.pop %v1496
    %v1519 = vtanh.pop %v1501
    %v1520 = vtanh.pop %v1504
    %v1521 = vtanh.pop %v1509
    %v1522 = vtanh.pop %v1512
    %1523 = vst [vmem:[#allocation16] sm:$0xff] %v1515
    %1524 = vst [vmem:[#allocation16 + $0x8] sm:$0xff] %v1516
    %1525 = vst [vmem:[#allocation16 + $0x10] sm:$0xff] %v1517
    %1526 = vst [vmem:[#allocation16 + $0x18] sm:$0xff] %v1518
    %1527 = vst [vmem:[#allocation16 + $0x20] sm:$0xff] %v1519
    %1528 = vst [vmem:[#allocation16 + $0x28] sm:$0xff] %v1520
    %1529 = vst [vmem:[#allocation16 + $0x30] sm:$0xff] %v1521
    %1530 = vst [vmem:[#allocation16 + $0x38] sm:$0xff] %v1522
    // Predicated region
    $region78: #{tpu_custom_call.1} parent=1 // pred_check
      _
    $region79: #{tpu_custom_call.1} parent=1 // pred_check_branch
      %1532 = sbr.rel (0) target = $region81
    $region80: #{tpu_custom_call.1} parent=1 // pred_region
      %s1534 = ssub.s32 1024, 1024
      %1535 = vsyncadd [#allocation4], %s1534
      %s1536 = sshll.u32 [#allocation16], 4
      %s1537 = int_to_ptr.vmem [resolvable:$true] %s1536
      %1542 = dma.vmem_to_hbm [thread:$0]  %s1537, 1024, %s11, [#allocation4], 128, 128, 8
    $region81: #{tpu_custom_call.1} parent=1 // pred_fallthru
      _
    // Predicated region
    $region82: #{tpu_custom_call.1} parent=1 // pred_check
      _
    $region83: #{tpu_custom_call.1} parent=1 // pred_check_branch
      %1544 = sbr.rel (0) target = $region85
    $region84: #{tpu_custom_call.1} parent=1 // pred_region
      %1545 = dma.done [#allocation4], 1024
    $region85: #{tpu_custom_call.1} parent=1 // pred_fallthru
      _
    %1546 = vsyncpa [#allocation3], 1
    %1547 = vsyncpa [#allocation6], 1
    %1548 = vsyncpa [#allocation9], 1
    %1549 = vsyncpa [#allocation12], 1
    %1550 = vsyncpa [#allocation15], 1
    %1551 = vsyncpa [#allocation4], 1

</llo_original>
